<compile_context>
chip_gen: v5e
topology: v5e:2x2
jax: 0.10.0
libtpu: 0.0.40
codegen_flags: <defaults>
</compile_context>

<pallas_src>
import functools

import jax
import jax.numpy as jnp
from jax.experimental import pallas as pl
from jax.experimental.pallas import tpu as pltpu


def _round_up(x, m):
    return (x + m - 1) // m * m


# ---------------------------------------------------------------------------
# Pass 1: ReLU -> implicit-GEMM conv -> accumulate per-channel sum / sum-of-squares
# Grid: one image (M-tile of Ho*Wo rows) per step; stats carried across steps
# in VMEM scratch, finalized (mean, inv_std) on the last step.
# ---------------------------------------------------------------------------
def _conv_stats_kernel(x_ref, w_ref, y_ref, stats_ref, ssum_ref, *,
                       kh, kw, stride, ho, wo, m_total, eps):
    step = pl.program_id(0)

    @pl.when(step == 0)
    def _init():
        ssum_ref[...] = jnp.zeros_like(ssum_ref)

    # ReLU on the zero-padded input (pad value 0 commutes with ReLU). Keep the
    # data-movement ops in f32; cast to bf16 only right before the MXU.
    x = jnp.maximum(x_ref[0].astype(jnp.float32), 0.0)      # (hp, wp, ci_p)
    ci = x.shape[-1]
    cp = y_ref.shape[-1]

    # Implicit GEMM: accumulate KH*KW shifted (Ho*Wo, C_in) @ (C_in, C_out) matmuls.
    acc = jnp.zeros((ho * wo, cp), jnp.float32)
    for i in range(kh):
        for j in range(kw):
            win = jax.lax.slice(
                x, (i, j, 0),
                (i + stride * (ho - 1) + 1, j + stride * (wo - 1) + 1, ci),
                (stride, stride, 1))                         # (ho, wo, ci)
            lhs = win.reshape(ho * wo, ci).astype(jnp.bfloat16)
            acc = acc + jnp.dot(lhs, w_ref[i, j],
                                preferred_element_type=jnp.float32)

    # Lane-dense (C_out padded to 128) f32 conv output for the normalize pass.
    y_ref[0] = acc

    # f32 sum / sumsq accumulators (E[y^2]-E[y]^2; fine at BN scales in f32).
    ssum_ref[0:1, :] += jnp.sum(acc, axis=0, keepdims=True)
    ssum_ref[1:2, :] += jnp.sum(acc * acc, axis=0, keepdims=True)

    @pl.when(step == pl.num_programs(0) - 1)
    def _finalize():
        inv_m = 1.0 / float(m_total)
        mean = ssum_ref[0:1, :] * inv_m
        var = ssum_ref[1:2, :] * inv_m - mean * mean          # biased, as BN uses
        stats_ref[0:1, :] = mean
        stats_ref[1:2, :] = jax.lax.rsqrt(var + eps)


# ---------------------------------------------------------------------------
# Pass 2: y -> (y - mean) * inv_std * gamma + beta   (all f32, lane-dense)
# ---------------------------------------------------------------------------
def _bn_apply_kernel(y_ref, stats_ref, g_ref, b_ref, o_ref):
    mean = stats_ref[0:1, :]                                  # (1, cp)
    inv = stats_ref[1:2, :]                                   # (1, cp)
    scale = g_ref[...] * inv                                  # (1, cp)
    shift = b_ref[...] - mean * scale                         # (1, cp)
    o_ref[0] = y_ref[0] * scale + shift                       # (m_img, cp)


@functools.partial(jax.jit, static_argnames=("stride", "padding", "eps"))
def relu_conv_bn(x, weight, gamma, beta, *, stride, padding, eps=1e-5):
    """x: (N, C_in, H, W) f32; weight: (C_out, C_in, KH, KW) f32."""
    n, c_in, h, w = x.shape
    c_out, _, kh, kw = weight.shape
    ho = (h + 2 * padding - kh) // stride + 1
    wo = (w + 2 * padding - kw) // stride + 1
    hp, wp = h + 2 * padding, w + 2 * padding

    ci_p = _round_up(max(c_in, 16), 16)      # tile-aligned contraction dim (bf16)
    cp = _round_up(max(c_out, 128), 128)     # lane-dense output channels
    m_img = ho * wo
    m_total = n * m_img

    # NCHW -> NHWC (boundary transpose forced by the PyTorch layout), spatial zero
    # pad + channel zero pad, bf16 for the MXU.
    x_nhwc = jnp.transpose(x, (0, 2, 3, 1))
    xp = jnp.pad(x_nhwc, ((0, 0), (padding, padding), (padding, padding),
                          (0, ci_p - c_in))).astype(jnp.bfloat16)

    # (C_out, C_in, KH, KW) -> (KH, KW, C_in_pad, C_out_pad), bf16, zero-padded.
    w_t = jnp.transpose(weight, (2, 3, 1, 0))
    w_t = jnp.pad(w_t, ((0, 0), (0, 0), (0, ci_p - c_in),
                        (0, cp - c_out))).astype(jnp.bfloat16)

    gamma_p = jnp.pad(gamma.astype(jnp.float32), (0, cp - c_out)).reshape(1, cp)
    beta_p = jnp.pad(beta.astype(jnp.float32), (0, cp - c_out)).reshape(1, cp)

    kernel1 = functools.partial(
        _conv_stats_kernel, kh=kh, kw=kw, stride=stride, ho=ho, wo=wo,
        m_total=m_total, eps=eps)

    vmem_limit = 32 * 1024 * 1024  # within scoped VMEM on v5e/v6e/v7x

    y, stats = pl.pallas_call(
        kernel1,
        grid=(n,),
        in_specs=[
            pl.BlockSpec((1, hp, wp, ci_p), lambda i: (i, 0, 0, 0)),   # one image
            pl.BlockSpec((kh, kw, ci_p, cp), lambda i: (0, 0, 0, 0)),  # weights resident
        ],
        out_specs=[
            pl.BlockSpec((1, m_img, cp), lambda i: (i, 0, 0)),         # conv output tile
            pl.BlockSpec((2, cp), lambda i: (0, 0)),                   # (mean, inv_std)
        ],
        out_shape=[
            jax.ShapeDtypeStruct((n, m_img, cp), jnp.float32),
            jax.ShapeDtypeStruct((2, cp), jnp.float32),
        ],
        scratch_shapes=[pltpu.VMEM((2, cp), jnp.float32)],             # sum / sumsq
        compiler_params=pltpu.CompilerParams(
            dimension_semantics=("arbitrary",),   # stats carried across steps
            vmem_limit_bytes=vmem_limit),
        cost_estimate=pl.CostEstimate(
            flops=2 * m_total * (kh * kw * ci_p) * cp,
            transcendentals=cp,
            bytes_accessed=xp.size * 2 + w_t.size * 2 + m_total * cp * 4 + 2 * cp * 4),
    )(xp, w_t)

    out_p = pl.pallas_call(
        _bn_apply_kernel,
        grid=(n,),
        in_specs=[
            pl.BlockSpec((1, m_img, cp), lambda i: (i, 0, 0)),
            pl.BlockSpec((2, cp), lambda i: (0, 0)),
            pl.BlockSpec((1, cp), lambda i: (0, 0)),
            pl.BlockSpec((1, cp), lambda i: (0, 0)),
        ],
        out_specs=pl.BlockSpec((1, m_img, cp), lambda i: (i, 0, 0)),
        out_shape=jax.ShapeDtypeStruct((n, m_img, cp), jnp.float32),
        compiler_params=pltpu.CompilerParams(
            dimension_semantics=("parallel",),    # independent per image (megacore)
            vmem_limit_bytes=vmem_limit),
        cost_estimate=pl.CostEstimate(
            flops=2 * m_total * cp, transcendentals=0,
            bytes_accessed=2 * m_total * cp * 4),
    )(y, stats, gamma_p, beta_p)

    # Slice off the zero-padded channels (their BN output is exactly 0), back to NCHW.
    out = out_p[:, :, :c_out].reshape(n, ho, wo, c_out).transpose(0, 3, 1, 2)
    return out


def _reference(x, weight, gamma, beta, *, stride, padding, eps=1e-5):
    relu_x = jnp.maximum(x, 0.0)
    conv = jax.lax.conv_general_dilated(
        relu_x, weight, (stride, stride),
        ((padding, padding), (padding, padding)),
        dimension_numbers=("NCHW", "OIHW", "NCHW"),
        precision=jax.lax.Precision.HIGHEST)
    mean = conv.mean(axis=(0, 2, 3), keepdims=True)
    var = conv.var(axis=(0, 2, 3), keepdims=True)  # biased, as BN uses
    c_out = weight.shape[0]
    return ((conv - mean) / jnp.sqrt(var + eps)
            * gamma.reshape(1, c_out, 1, 1) + beta.reshape(1, c_out, 1, 1))


if __name__ == "__main__":
    # desc = {channel_in: 4, channel_out: 8, kernel_size: 3, stride: 1, padding: 1, affine: True}
    N, C_IN, C_OUT, H, W = 2, 4, 8, 16, 16
    KH = KW = 3
    STRIDE, PADDING = 1, 1

    key = jax.random.PRNGKey(0)
    kx, kw_ = jax.random.split(key)
    x = jax.random.normal(kx, (N, C_IN, H, W), dtype=jnp.float32)
    weight = 0.1 * jax.random.normal(kw_, (C_OUT, C_IN, KH, KW), dtype=jnp.float32)
    # BatchNorm2d default (affine=True) init: gamma = 1, beta = 0
    gamma = jnp.ones((C_OUT,), dtype=jnp.float32)
    beta = jnp.zeros((C_OUT,), dtype=jnp.float32)

    out = relu_conv_bn(x, weight, gamma, beta, stride=STRIDE, padding=PADDING)
    out = jax.block_until_ready(out)

    ref = _reference(x, weight, gamma, beta, stride=STRIDE, padding=PADDING)
    assert out.shape == (N, C_OUT, H, W)
    err = float(jnp.max(jnp.abs(out - ref)))
    # Tolerance accounts for bf16 MXU inputs (per perf feedback) vs. the f32
    # reference on unit-variance (BN-normalized) outputs; accumulation/BN are f32.
    assert err < 5e-2, f"mismatch vs. reference: max abs err = {err}"

    print("KERNEL_OK")
</pallas_src>

<mosaic_0001>
module attributes {stable_mosaic.version = 11 : i64} {
  func.func @_bn_apply_kernel(%arg0: i32, %arg1: memref<1x256x128xf32, #tpu.memory_space<vmem>>, %arg2: memref<2x128xf32, #tpu.memory_space<vmem>>, %arg3: memref<1x128xf32, #tpu.memory_space<vmem>>, %arg4: memref<1x128xf32, #tpu.memory_space<vmem>>, %arg5: memref<1x256x128xf32, #tpu.memory_space<vmem>>) attributes {dimension_semantics = [#tpu.dimension_semantics<parallel>], iteration_bounds = array<i64: 2>, scalar_prefetch = 0 : i64, scratch_operands = 0 : i64, tpu.core_type = #tpu.core_type<tc>, window_params = [{transform_indices = @transform_0, window_bounds = array<i64: 1, 256, 128>}, {pipeline_mode = #tpu.pipeline_mode<synchronous>, transform_indices = @transform_1, window_bounds = array<i64: 2, 128>}, {pipeline_mode = #tpu.pipeline_mode<synchronous>, transform_indices = @transform_2, window_bounds = array<i64: 1, 128>}, {pipeline_mode = #tpu.pipeline_mode<synchronous>, transform_indices = @transform_3, window_bounds = array<i64: 1, 128>}, {transform_indices = @transform_4, window_bounds = array<i64: 1, 256, 128>}]} {
    %c0 = arith.constant 0 : index
    %c0_0 = arith.constant 0 : index
    %0 = vector.load %arg2[%c0, %c0_0] : memref<2x128xf32, #tpu.memory_space<vmem>>, vector<1x128xf32>
    %c1 = arith.constant 1 : index
    %c0_1 = arith.constant 0 : index
    %1 = vector.load %arg2[%c1, %c0_1] : memref<2x128xf32, #tpu.memory_space<vmem>>, vector<1x128xf32>
    %c0_2 = arith.constant 0 : index
    %c0_3 = arith.constant 0 : index
    %2 = vector.load %arg3[%c0_2, %c0_3] : memref<1x128xf32, #tpu.memory_space<vmem>>, vector<1x128xf32>
    %3 = arith.mulf %2, %1 : vector<1x128xf32>
    %c0_4 = arith.constant 0 : index
    %c0_5 = arith.constant 0 : index
    %4 = vector.load %arg4[%c0_4, %c0_5] : memref<1x128xf32, #tpu.memory_space<vmem>>, vector<1x128xf32>
    %5 = arith.mulf %0, %3 : vector<1x128xf32>
    %6 = arith.subf %4, %5 : vector<1x128xf32>
    %c0_6 = arith.constant 0 : index
    %c0_7 = arith.constant 0 : index
    %c0_8 = arith.constant 0 : index
    %7 = vector.load %arg1[%c0_6, %c0_7, %c0_8] : memref<1x256x128xf32, #tpu.memory_space<vmem>>, vector<1x256x128xf32>
    %8 = vector.shape_cast %7 : vector<1x256x128xf32> to vector<256x128xf32>
    %9 = vector.broadcast %3 : vector<1x128xf32> to vector<256x128xf32>
    %10 = arith.mulf %8, %9 : vector<256x128xf32>
    %11 = vector.broadcast %6 : vector<1x128xf32> to vector<256x128xf32>
    %12 = arith.addf %10, %11 : vector<256x128xf32>
    %c0_9 = arith.constant 0 : index
    %c0_10 = arith.constant 0 : index
    %c0_11 = arith.constant 0 : index
    %13 = vector.load %arg5[%c0_9, %c0_10, %c0_11] : memref<1x256x128xf32, #tpu.memory_space<vmem>>, vector<1x256x128xf32>
    %14 = vector.shape_cast %13 : vector<1x256x128xf32> to vector<256x128xf32>
    %15 = vector.shape_cast %12 : vector<256x128xf32> to vector<1x256x128xf32>
    tpu.vector_store %arg5[%c0_9, %c0_10, %c0_11], %15 {strides = array<i32>} : memref<1x256x128xf32, #tpu.memory_space<vmem>>, vector<1x256x128xf32>,
    return
  }
  func.func @transform_0(%arg0: i32) -> (i32, i32, i32) {
    %c0_i32 = arith.constant 0 : i32
    %c0_i32_0 = arith.constant 0 : i32
    %c0_i32_1 = arith.constant 0 : i32
    return %arg0, %c0_i32, %c0_i32_0 : i32, i32, i32
  }
  func.func @transform_1(%arg0: i32) -> (i32, i32) {
    %c0_i32 = arith.constant 0 : i32
    %c0_i32_0 = arith.constant 0 : i32
    %c0_i32_1 = arith.constant 0 : i32
    return %c0_i32, %c0_i32_0 : i32, i32
  }
  func.func @transform_2(%arg0: i32) -> (i32, i32) {
    %c0_i32 = arith.constant 0 : i32
    %c0_i32_0 = arith.constant 0 : i32
    %c0_i32_1 = arith.constant 0 : i32
    return %c0_i32, %c0_i32_0 : i32, i32
  }
  func.func @transform_3(%arg0: i32) -> (i32, i32) {
    %c0_i32 = arith.constant 0 : i32
    %c0_i32_0 = arith.constant 0 : i32
    %c0_i32_1 = arith.constant 0 : i32
    return %c0_i32, %c0_i32_0 : i32, i32
  }
  func.func @transform_4(%arg0: i32) -> (i32, i32, i32) {
    %c0_i32 = arith.constant 0 : i32
    %c0_i32_0 = arith.constant 0 : i32
    %c0_i32_1 = arith.constant 0 : i32
    return %arg0, %c0_i32, %c0_i32_0 : i32, i32, i32
  }
}

module attributes {stable_mosaic.version = 11 : i64} {
  func.func @_conv_stats_kernel(%arg0: i32, %arg1: memref<1x18x18x16xbf16, #tpu.memory_space<vmem>>, %arg2: memref<3x3x16x128xbf16, #tpu.memory_space<vmem>>, %arg3: memref<1x256x128xf32, #tpu.memory_space<vmem>>, %arg4: memref<2x128xf32, #tpu.memory_space<vmem>>, %arg5: memref<2x128xf32, #tpu.memory_space<vmem>>) attributes {dimension_semantics = [#tpu.dimension_semantics<arbitrary>], iteration_bounds = array<i64: 2>, scalar_prefetch = 0 : i64, scratch_operands = 1 : i64, tpu.core_type = #tpu.core_type<tc>, window_params = [{transform_indices = @transform_0, window_bounds = array<i64: 1, 18, 18, 16>}, {pipeline_mode = #tpu.pipeline_mode<synchronous>, transform_indices = @transform_1, window_bounds = array<i64: 3, 3, 16, 128>}, {transform_indices = @transform_2, window_bounds = array<i64: 1, 256, 128>}, {pipeline_mode = #tpu.pipeline_mode<synchronous>, transform_indices = @transform_3, window_bounds = array<i64: 2, 128>}]} {
    %c0_i32 = arith.constant 0 : i32
    %0 = arith.cmpi eq, %arg0, %c0_i32 : i32
    %1 = arith.extui %0 : i1 to i32
    %c0_i32_0 = arith.constant 0 : i32
    %2 = arith.cmpi ne, %1, %c0_i32_0 : i32
    scf.if %2 {
      %cst_62 = arith.constant 0.000000e+00 : f32
      %89 = vector.broadcast %cst_62 : f32 to vector<2x128xf32>
      %c0_63 = arith.constant 0 : index
      %c0_64 = arith.constant 0 : index
      %90 = vector.load %arg5[%c0_63, %c0_64] : memref<2x128xf32, #tpu.memory_space<vmem>>, vector<2x128xf32>
      tpu.vector_store %arg5[%c0_63, %c0_64], %89 {strides = array<i32>} : memref<2x128xf32, #tpu.memory_space<vmem>>, vector<2x128xf32>,
    } else {
    }
    %c0 = arith.constant 0 : index
    %c0_1 = arith.constant 0 : index
    %c0_2 = arith.constant 0 : index
    %c0_3 = arith.constant 0 : index
    %3 = vector.load %arg1[%c0, %c0_1, %c0_2, %c0_3] : memref<1x18x18x16xbf16, #tpu.memory_space<vmem>>, vector<1x18x18x16xbf16>
    %4 = vector.shape_cast %3 : vector<1x18x18x16xbf16> to vector<18x18x16xbf16>
    %5 = arith.extf %4 : vector<18x18x16xbf16> to vector<18x18x16xf32>
    %cst = arith.constant 0.000000e+00 : f32
    %6 = vector.broadcast %cst : f32 to vector<18x18x16xf32>
    %7 = arith.maximumf %5, %6 : vector<18x18x16xf32>
    %cst_4 = arith.constant 0.000000e+00 : f32
    %8 = vector.broadcast %cst_4 : f32 to vector<256x128xf32>
    %9 = vector.extract_strided_slice %7 {offsets = [0, 0, 0], sizes = [16, 16, 16], strides = [1, 1, 1]} : vector<18x18x16xf32> to vector<16x16x16xf32>
    %10 = vector.shape_cast %9 : vector<16x16x16xf32> to vector<256x16xf32>
    %11 = arith.truncf %10 : vector<256x16xf32> to vector<256x16xbf16>
    %c0_5 = arith.constant 0 : index
    %c0_6 = arith.constant 0 : index
    %c0_7 = arith.constant 0 : index
    %c0_8 = arith.constant 0 : index
    %12 = vector.load %arg2[%c0_5, %c0_6, %c0_7, %c0_8] : memref<3x3x16x128xbf16, #tpu.memory_space<vmem>>, vector<1x1x16x128xbf16>
    %13 = vector.shape_cast %12 : vector<1x1x16x128xbf16> to vector<16x128xbf16>
    %cst_9 = arith.constant dense<0.000000e+00> : vector<256x128xf32>
    %14 = tpu.matmul %11, %13, %cst_9 {dimension_numbers = #tpu.dot_dimension_numbers<[1], [0], [0], [1], [0, 0, 1, 1], [], []>} : vector<256x16xbf16>, vector<16x128xbf16>, vector<256x128xf32> -> vector<256x128xf32>
    %15 = arith.addf %8, %14 : vector<256x128xf32>
    %16 = vector.extract_strided_slice %7 {offsets = [0, 1, 0], sizes = [16, 16, 16], strides = [1, 1, 1]} : vector<18x18x16xf32> to vector<16x16x16xf32>
    %17 = vector.shape_cast %16 : vector<16x16x16xf32> to vector<256x16xf32>
    %18 = arith.truncf %17 : vector<256x16xf32> to vector<256x16xbf16>
    %c0_10 = arith.constant 0 : index
    %c1 = arith.constant 1 : index
    %c0_11 = arith.constant 0 : index
    %c0_12 = arith.constant 0 : index
    %19 = vector.load %arg2[%c0_10, %c1, %c0_11, %c0_12] : memref<3x3x16x128xbf16, #tpu.memory_space<vmem>>, vector<1x1x16x128xbf16>
    %20 = vector.shape_cast %19 : vector<1x1x16x128xbf16> to vector<16x128xbf16>
    %cst_13 = arith.constant dense<0.000000e+00> : vector<256x128xf32>
    %21 = tpu.matmul %18, %20, %cst_13 {dimension_numbers = #tpu.dot_dimension_numbers<[1], [0], [0], [1], [0, 0, 1, 1], [], []>} : vector<256x16xbf16>, vector<16x128xbf16>, vector<256x128xf32> -> vector<256x128xf32>
    %22 = arith.addf %15, %21 : vector<256x128xf32>
    %23 = vector.extract_strided_slice %7 {offsets = [0, 2, 0], sizes = [16, 16, 16], strides = [1, 1, 1]} : vector<18x18x16xf32> to vector<16x16x16xf32>
    %24 = vector.shape_cast %23 : vector<16x16x16xf32> to vector<256x16xf32>
    %25 = arith.truncf %24 : vector<256x16xf32> to vector<256x16xbf16>
    %c0_14 = arith.constant 0 : index
    %c2 = arith.constant 2 : index
    %c0_15 = arith.constant 0 : index
    %c0_16 = arith.constant 0 : index
    %26 = vector.load %arg2[%c0_14, %c2, %c0_15, %c0_16] : memref<3x3x16x128xbf16, #tpu.memory_space<vmem>>, vector<1x1x16x128xbf16>
    %27 = vector.shape_cast %26 : vector<1x1x16x128xbf16> to vector<16x128xbf16>
    %cst_17 = arith.constant dense<0.000000e+00> : vector<256x128xf32>
    %28 = tpu.matmul %25, %27, %cst_17 {dimension_numbers = #tpu.dot_dimension_numbers<[1], [0], [0], [1], [0, 0, 1, 1], [], []>} : vector<256x16xbf16>, vector<16x128xbf16>, vector<256x128xf32> -> vector<256x128xf32>
    %29 = arith.addf %22, %28 : vector<256x128xf32>
    %30 = vector.extract_strided_slice %7 {offsets = [1, 0, 0], sizes = [16, 16, 16], strides = [1, 1, 1]} : vector<18x18x16xf32> to vector<16x16x16xf32>
    %31 = vector.shape_cast %30 : vector<16x16x16xf32> to vector<256x16xf32>
    %32 = arith.truncf %31 : vector<256x16xf32> to vector<256x16xbf16>
    %c1_18 = arith.constant 1 : index
    %c0_19 = arith.constant 0 : index
    %c0_20 = arith.constant 0 : index
    %c0_21 = arith.constant 0 : index
    %33 = vector.load %arg2[%c1_18, %c0_19, %c0_20, %c0_21] : memref<3x3x16x128xbf16, #tpu.memory_space<vmem>>, vector<1x1x16x128xbf16>
    %34 = vector.shape_cast %33 : vector<1x1x16x128xbf16> to vector<16x128xbf16>
    %cst_22 = arith.constant dense<0.000000e+00> : vector<256x128xf32>
    %35 = tpu.matmul %32, %34, %cst_22 {dimension_numbers = #tpu.dot_dimension_numbers<[1], [0], [0], [1], [0, 0, 1, 1], [], []>} : vector<256x16xbf16>, vector<16x128xbf16>, vector<256x128xf32> -> vector<256x128xf32>
    %36 = arith.addf %29, %35 : vector<256x128xf32>
    %37 = vector.extract_strided_slice %7 {offsets = [1, 1, 0], sizes = [16, 16, 16], strides = [1, 1, 1]} : vector<18x18x16xf32> to vector<16x16x16xf32>
    %38 = vector.shape_cast %37 : vector<16x16x16xf32> to vector<256x16xf32>
    %39 = arith.truncf %38 : vector<256x16xf32> to vector<256x16xbf16>
    %c1_23 = arith.constant 1 : index
    %c1_24 = arith.constant 1 : index
    %c0_25 = arith.constant 0 : index
    %c0_26 = arith.constant 0 : index
    %40 = vector.load %arg2[%c1_23, %c1_24, %c0_25, %c0_26] : memref<3x3x16x128xbf16, #tpu.memory_space<vmem>>, vector<1x1x16x128xbf16>
    %41 = vector.shape_cast %40 : vector<1x1x16x128xbf16> to vector<16x128xbf16>
    %cst_27 = arith.constant dense<0.000000e+00> : vector<256x128xf32>
    %42 = tpu.matmul %39, %41, %cst_27 {dimension_numbers = #tpu.dot_dimension_numbers<[1], [0], [0], [1], [0, 0, 1, 1], [], []>} : vector<256x16xbf16>, vector<16x128xbf16>, vector<256x128xf32> -> vector<256x128xf32>
    %43 = arith.addf %36, %42 : vector<256x128xf32>
    %44 = vector.extract_strided_slice %7 {offsets = [1, 2, 0], sizes = [16, 16, 16], strides = [1, 1, 1]} : vector<18x18x16xf32> to vector<16x16x16xf32>
    %45 = vector.shape_cast %44 : vector<16x16x16xf32> to vector<256x16xf32>
    %46 = arith.truncf %45 : vector<256x16xf32> to vector<256x16xbf16>
    %c1_28 = arith.constant 1 : index
    %c2_29 = arith.constant 2 : index
    %c0_30 = arith.constant 0 : index
    %c0_31 = arith.constant 0 : index
    %47 = vector.load %arg2[%c1_28, %c2_29, %c0_30, %c0_31] : memref<3x3x16x128xbf16, #tpu.memory_space<vmem>>, vector<1x1x16x128xbf16>
    %48 = vector.shape_cast %47 : vector<1x1x16x128xbf16> to vector<16x128xbf16>
    %cst_32 = arith.constant dense<0.000000e+00> : vector<256x128xf32>
    %49 = tpu.matmul %46, %48, %cst_32 {dimension_numbers = #tpu.dot_dimension_numbers<[1], [0], [0], [1], [0, 0, 1, 1], [], []>} : vector<256x16xbf16>, vector<16x128xbf16>, vector<256x128xf32> -> vector<256x128xf32>
    %50 = arith.addf %43, %49 : vector<256x128xf32>
    %51 = vector.extract_strided_slice %7 {offsets = [2, 0, 0], sizes = [16, 16, 16], strides = [1, 1, 1]} : vector<18x18x16xf32> to vector<16x16x16xf32>
    %52 = vector.shape_cast %51 : vector<16x16x16xf32> to vector<256x16xf32>
    %53 = arith.truncf %52 : vector<256x16xf32> to vector<256x16xbf16>
    %c2_33 = arith.constant 2 : index
    %c0_34 = arith.constant 0 : index
    %c0_35 = arith.constant 0 : index
    %c0_36 = arith.constant 0 : index
    %54 = vector.load %arg2[%c2_33, %c0_34, %c0_35, %c0_36] : memref<3x3x16x128xbf16, #tpu.memory_space<vmem>>, vector<1x1x16x128xbf16>
    %55 = vector.shape_cast %54 : vector<1x1x16x128xbf16> to vector<16x128xbf16>
    %cst_37 = arith.constant dense<0.000000e+00> : vector<256x128xf32>
    %56 = tpu.matmul %53, %55, %cst_37 {dimension_numbers = #tpu.dot_dimension_numbers<[1], [0], [0], [1], [0, 0, 1, 1], [], []>} : vector<256x16xbf16>, vector<16x128xbf16>, vector<256x128xf32> -> vector<256x128xf32>
    %57 = arith.addf %50, %56 : vector<256x128xf32>
    %58 = vector.extract_strided_slice %7 {offsets = [2, 1, 0], sizes = [16, 16, 16], strides = [1, 1, 1]} : vector<18x18x16xf32> to vector<16x16x16xf32>
    %59 = vector.shape_cast %58 : vector<16x16x16xf32> to vector<256x16xf32>
    %60 = arith.truncf %59 : vector<256x16xf32> to vector<256x16xbf16>
    %c2_38 = arith.constant 2 : index
    %c1_39 = arith.constant 1 : index
    %c0_40 = arith.constant 0 : index
    %c0_41 = arith.constant 0 : index
    %61 = vector.load %arg2[%c2_38, %c1_39, %c0_40, %c0_41] : memref<3x3x16x128xbf16, #tpu.memory_space<vmem>>, vector<1x1x16x128xbf16>
    %62 = vector.shape_cast %61 : vector<1x1x16x128xbf16> to vector<16x128xbf16>
    %cst_42 = arith.constant dense<0.000000e+00> : vector<256x128xf32>
    %63 = tpu.matmul %60, %62, %cst_42 {dimension_numbers = #tpu.dot_dimension_numbers<[1], [0], [0], [1], [0, 0, 1, 1], [], []>} : vector<256x16xbf16>, vector<16x128xbf16>, vector<256x128xf32> -> vector<256x128xf32>
    %64 = arith.addf %57, %63 : vector<256x128xf32>
    %65 = vector.extract_strided_slice %7 {offsets = [2, 2, 0], sizes = [16, 16, 16], strides = [1, 1, 1]} : vector<18x18x16xf32> to vector<16x16x16xf32>
    %66 = vector.shape_cast %65 : vector<16x16x16xf32> to vector<256x16xf32>
    %67 = arith.truncf %66 : vector<256x16xf32> to vector<256x16xbf16>
    %c2_43 = arith.constant 2 : index
    %c2_44 = arith.constant 2 : index
    %c0_45 = arith.constant 0 : index
    %c0_46 = arith.constant 0 : index
    %68 = vector.load %arg2[%c2_43, %c2_44, %c0_45, %c0_46] : memref<3x3x16x128xbf16, #tpu.memory_space<vmem>>, vector<1x1x16x128xbf16>
    %69 = vector.shape_cast %68 : vector<1x1x16x128xbf16> to vector<16x128xbf16>
    %cst_47 = arith.constant dense<0.000000e+00> : vector<256x128xf32>
    %70 = tpu.matmul %67, %69, %cst_47 {dimension_numbers = #tpu.dot_dimension_numbers<[1], [0], [0], [1], [0, 0, 1, 1], [], []>} : vector<256x16xbf16>, vector<16x128xbf16>, vector<256x128xf32> -> vector<256x128xf32>
    %71 = arith.addf %64, %70 : vector<256x128xf32>
    %c0_48 = arith.constant 0 : index
    %c0_49 = arith.constant 0 : index
    %c0_50 = arith.constant 0 : index
    %72 = vector.load %arg3[%c0_48, %c0_49, %c0_50] : memref<1x256x128xf32, #tpu.memory_space<vmem>>, vector<1x256x128xf32>
    %73 = vector.shape_cast %72 : vector<1x256x128xf32> to vector<256x128xf32>
    %74 = vector.shape_cast %71 : vector<256x128xf32> to vector<1x256x128xf32>
    tpu.vector_store %arg3[%c0_48, %c0_49, %c0_50], %74 {strides = array<i32>} : memref<1x256x128xf32, #tpu.memory_space<vmem>>, vector<1x256x128xf32>,
    %c0_51 = arith.constant 0 : index
    %c0_52 = arith.constant 0 : index
    %75 = vector.load %arg5[%c0_51, %c0_52] : memref<2x128xf32, #tpu.memory_space<vmem>>, vector<1x128xf32>
    %cst_53 = arith.constant dense<0.000000e+00> : vector<128xf32>
    %76 = vector.multi_reduction <add>, %71, %cst_53 [0] : vector<256x128xf32> to vector<128xf32>
    %77 = vector.shape_cast %76 : vector<128xf32> to vector<1x128xf32>
    %78 = arith.addf %75, %77 : vector<1x128xf32>
    %c0_54 = arith.constant 0 : index
    %c0_55 = arith.constant 0 : index
    %79 = vector.load %arg5[%c0_54, %c0_55] : memref<2x128xf32, #tpu.memory_space<vmem>>, vector<1x128xf32>
    tpu.vector_store %arg5[%c0_54, %c0_55], %78 {strides = array<i32>} : memref<2x128xf32, #tpu.memory_space<vmem>>, vector<1x128xf32>,
    %c1_56 = arith.constant 1 : index
    %c0_57 = arith.constant 0 : index
    %80 = vector.load %arg5[%c1_56, %c0_57] : memref<2x128xf32, #tpu.memory_space<vmem>>, vector<1x128xf32>
    %81 = arith.mulf %71, %71 : vector<256x128xf32>
    %cst_58 = arith.constant dense<0.000000e+00> : vector<128xf32>
    %82 = vector.multi_reduction <add>, %81, %cst_58 [0] : vector<256x128xf32> to vector<128xf32>
    %83 = vector.shape_cast %82 : vector<128xf32> to vector<1x128xf32>
    %84 = arith.addf %80, %83 : vector<1x128xf32>
    %c1_59 = arith.constant 1 : index
    %c0_60 = arith.constant 0 : index
    %85 = vector.load %arg5[%c1_59, %c0_60] : memref<2x128xf32, #tpu.memory_space<vmem>>, vector<1x128xf32>
    tpu.vector_store %arg5[%c1_59, %c0_60], %84 {strides = array<i32>} : memref<2x128xf32, #tpu.memory_space<vmem>>, vector<1x128xf32>,
    %c1_i32 = arith.constant 1 : i32
    %86 = arith.cmpi eq, %arg0, %c1_i32 : i32
    %87 = arith.extui %86 : i1 to i32
    %c0_i32_61 = arith.constant 0 : i32
    %88 = arith.cmpi ne, %87, %c0_i32_61 : i32
    scf.if %88 {
      %c0_62 = arith.constant 0 : index
      %c0_63 = arith.constant 0 : index
      %89 = vector.load %arg5[%c0_62, %c0_63] : memref<2x128xf32, #tpu.memory_space<vmem>>, vector<1x128xf32>
      %cst_64 = arith.constant 0.001953125 : f32
      %90 = vector.broadcast %cst_64 : f32 to vector<1x128xf32>
      %91 = arith.mulf %89, %90 : vector<1x128xf32>
      %c1_65 = arith.constant 1 : index
      %c0_66 = arith.constant 0 : index
      %92 = vector.load %arg5[%c1_65, %c0_66] : memref<2x128xf32, #tpu.memory_space<vmem>>, vector<1x128xf32>
      %cst_67 = arith.constant 0.001953125 : f32
      %93 = vector.broadcast %cst_67 : f32 to vector<1x128xf32>
      %94 = arith.mulf %92, %93 : vector<1x128xf32>
      %95 = arith.mulf %91, %91 : vector<1x128xf32>
      %96 = arith.subf %94, %95 : vector<1x128xf32>
      %c0_68 = arith.constant 0 : index
      %c0_69 = arith.constant 0 : index
      %97 = vector.load %arg4[%c0_68, %c0_69] : memref<2x128xf32, #tpu.memory_space<vmem>>, vector<1x128xf32>
      tpu.vector_store %arg4[%c0_68, %c0_69], %91 {strides = array<i32>} : memref<2x128xf32, #tpu.memory_space<vmem>>, vector<1x128xf32>,
      %cst_70 = arith.constant 9.99999974E-6 : f32
      %98 = vector.broadcast %cst_70 : f32 to vector<1x128xf32>
      %99 = arith.addf %96, %98 : vector<1x128xf32>
      %100 = math.rsqrt %99 : vector<1x128xf32>
      %c1_71 = arith.constant 1 : index
      %c0_72 = arith.constant 0 : index
      %101 = vector.load %arg4[%c1_71, %c0_72] : memref<2x128xf32, #tpu.memory_space<vmem>>, vector<1x128xf32>
      tpu.vector_store %arg4[%c1_71, %c0_72], %100 {strides = array<i32>} : memref<2x128xf32, #tpu.memory_space<vmem>>, vector<1x128xf32>,
    } else {
    }
    return
  }
  func.func @transform_0(%arg0: i32) -> (i32, i32, i32, i32) {
    %c0_i32 = arith.constant 0 : i32
    %c0_i32_0 = arith.constant 0 : i32
    %c0_i32_1 = arith.constant 0 : i32
    %c0_i32_2 = arith.constant 0 : i32
    return %arg0, %c0_i32, %c0_i32_0, %c0_i32_1 : i32, i32, i32, i32
  }
  func.func @transform_1(%arg0: i32) -> (i32, i32, i32, i32) {
    %c0_i32 = arith.constant 0 : i32
    %c0_i32_0 = arith.constant 0 : i32
    %c0_i32_1 = arith.constant 0 : i32
    %c0_i32_2 = arith.constant 0 : i32
    %c0_i32_3 = arith.constant 0 : i32
    return %c0_i32, %c0_i32_0, %c0_i32_1, %c0_i32_2 : i32, i32, i32, i32
  }
  func.func @transform_2(%arg0: i32) -> (i32, i32, i32) {
    %c0_i32 = arith.constant 0 : i32
    %c0_i32_0 = arith.constant 0 : i32
    %c0_i32_1 = arith.constant 0 : i32
    return %arg0, %c0_i32, %c0_i32_0 : i32, i32, i32
  }
  func.func @transform_3(%arg0: i32) -> (i32, i32) {
    %c0_i32 = arith.constant 0 : i32
    %c0_i32_0 = arith.constant 0 : i32
    %c0_i32_1 = arith.constant 0 : i32
    return %c0_i32, %c0_i32_0 : i32, i32
  }
}

</mosaic_0001>

<llo_original>
// kernel: relu_conv_bn.3
$region0: #{relu_conv_bn.3}
  #allocation0 [shape = 'u32[]', space=smem, size = 0x4, offset = 0x4, fixed_abs, tag = 'smem constant byte address 0x4 - core index']
  #allocation1 [shape = 'u32[72,128]{1,0:T(1,128)}', space=vmem, size = 0x9000, scoped, tag = 'internal scratch']
  %s0 = inlined_call_operand.vmem [shape: f32[2,256,128], index: 0, kind: input, shape index: {}]
  %s1 = inlined_call_operand.vmem [shape: f32[2,128], index: 1, kind: input, shape index: {}]
  %s2 = inlined_call_operand.vmem [shape: f32[1,128], index: 2, kind: input, shape index: {}]
  %s3 = inlined_call_operand.vmem [shape: f32[1,128], index: 3, kind: input, shape index: {}]
  %s4 = inlined_call_operand.vmem [shape: f32[2,256,128], index: 4, kind: output, shape index: {}]
  %s5 = sld [smem:[#allocation0]]
  $region49: #{relu_conv_bn.3} parent=0
    _
  %s7 = ssub.s32 1, %s5
  %s8 = scalar_select 0, %s7, %s5
  loop: start=0, step=1, limit=4
  $region2: #{relu_conv_bn.3} parent=0 // loop_pre_header
    _
  $region3: #{relu_conv_bn.3} parent=0 // loop_header
    %s10 = sphi 0, %s14
    %p11 = scmp.ge.s32.totalorder %s10, 4
    %s20 = sphi 0, %s22
    %s23 = sphi 0, %s20
    %s24 = sphi 0, %s23
    %s40 = sphi 0, %s24
    %s44 = sphi 0, %s44
    %s46 = sphi 0, %s44
    %s47 = sphi 0, %s46
    %s61 = sphi 0, %s47
    %s65 = sphi 0, %s65
    %s67 = sphi 0, %s65
    %s68 = sphi 0, %s67
    %s82 = sphi 0, %s68
    %s86 = sphi 0, %s86
    %s88 = sphi 0, %s86
    %s89 = sphi 0, %s88
    %s103 = sphi 0, %s89
    %s109 = sphi 0, %s111
    %s112 = sphi 0, %s109
    %s113 = sphi 0, %s112
    %s129 = sphi 0, %s113
  $region4: #{relu_conv_bn.3} parent=0 // loop_header_branch
    %13 = sbr.rel (%p11) target = $region8
  $region5: #{relu_conv_bn.3} parent=0 // loop_body
    %s15 = ssub.s32 %s10, 1
    %s16 = ssub.s32 %s10, 2
    %s17 = sadd.s32 %s10, 1
    %s18 = ssub.s32 %s10, %s17
    %p19 = scmp.eq.s32.totalorder %s18, 0
    %s21 = sadd.s32 %s20, 1
    %s22 = scalar_select %p19, %s20, %s21
    %p25 = pneg %p19
    %p26 = scmp.eq.s32.totalorder %s10, 1
    %p27 = por %p25, %p26
    %p28 = scmp.ne.s32.totalorder %s20, %s23
    %p29 = scmp.eq.s32.totalorder %s10, 0
    %p30 = por %p28, %p29
    %p31 = scmp.ne.s32.totalorder %s20, %s23
    %p32 = scmp.eq.s32.totalorder %s15, 1
    %p33 = por %p31, %p32
    %p34 = scmp.ne.s32.totalorder %s23, %s24
    %p35 = scmp.eq.s32.totalorder %s15, 0
    %p36 = por %p34, %p35
    %p37 = scmp.ne.s32.totalorder %s23, %s24
    %p38 = scmp.eq.s32.totalorder %s16, 1
    %p39 = por %p37, %p38
    %p41 = scmp.ne.s32.totalorder %s24, %s40
    %p42 = scmp.eq.s32.totalorder %s16, 0
    %p43 = por %p41, %p42
    %s45 = sadd.s32 %s44, 1
    %p48 = scmp.eq.s32.totalorder %s10, 1
    %p49 = scmp.ne.s32.totalorder %s44, %s46
    %p50 = scmp.eq.s32.totalorder %s10, 0
    %p51 = por %p49, %p50
    %p52 = scmp.ne.s32.totalorder %s44, %s46
    %p53 = scmp.eq.s32.totalorder %s15, 1
    %p54 = por %p52, %p53
    %p55 = scmp.ne.s32.totalorder %s46, %s47
    %p56 = scmp.eq.s32.totalorder %s15, 0
    %p57 = por %p55, %p56
    %p58 = scmp.ne.s32.totalorder %s46, %s47
    %p59 = scmp.eq.s32.totalorder %s16, 1
    %p60 = por %p58, %p59
    %p62 = scmp.ne.s32.totalorder %s47, %s61
    %p63 = scmp.eq.s32.totalorder %s16, 0
    %p64 = por %p62, %p63
    %s66 = sadd.s32 %s65, 1
    %p69 = scmp.eq.s32.totalorder %s10, 1
    %p70 = scmp.ne.s32.totalorder %s65, %s67
    %p71 = scmp.eq.s32.totalorder %s10, 0
    %p72 = por %p70, %p71
    %p73 = scmp.ne.s32.totalorder %s65, %s67
    %p74 = scmp.eq.s32.totalorder %s15, 1
    %p75 = por %p73, %p74
    %p76 = scmp.ne.s32.totalorder %s67, %s68
    %p77 = scmp.eq.s32.totalorder %s15, 0
    %p78 = por %p76, %p77
    %p79 = scmp.ne.s32.totalorder %s67, %s68
    %p80 = scmp.eq.s32.totalorder %s16, 1
    %p81 = por %p79, %p80
    %p83 = scmp.ne.s32.totalorder %s68, %s82
    %p84 = scmp.eq.s32.totalorder %s16, 0
    %p85 = por %p83, %p84
    %s87 = sadd.s32 %s86, 1
    %p90 = scmp.eq.s32.totalorder %s10, 1
    %p91 = scmp.ne.s32.totalorder %s86, %s88
    %p92 = scmp.eq.s32.totalorder %s10, 0
    %p93 = por %p91, %p92
    %p94 = scmp.ne.s32.totalorder %s86, %s88
    %p95 = scmp.eq.s32.totalorder %s15, 1
    %p96 = por %p94, %p95
    %p97 = scmp.ne.s32.totalorder %s88, %s89
    %p98 = scmp.eq.s32.totalorder %s15, 0
    %p99 = por %p97, %p98
    %p100 = scmp.ne.s32.totalorder %s88, %s89
    %p101 = scmp.eq.s32.totalorder %s16, 1
    %p102 = por %p100, %p101
    %p104 = scmp.ne.s32.totalorder %s89, %s103
    %p105 = scmp.eq.s32.totalorder %s16, 0
    %p106 = por %p104, %p105
    %s107 = ssub.s32 %s10, %s17
    %p108 = scmp.eq.s32.totalorder %s107, 0
    %s110 = sadd.s32 %s109, 1
    %s111 = scalar_select %p108, %s109, %s110
    %p114 = pneg %p108
    %p115 = scmp.eq.s32.totalorder %s10, 1
    %p116 = por %p114, %p115
    %p117 = scmp.ne.s32.totalorder %s109, %s112
    %p118 = scmp.eq.s32.totalorder %s10, 0
    %p119 = por %p117, %p118
    %p120 = scmp.ne.s32.totalorder %s109, %s112
    %p121 = scmp.eq.s32.totalorder %s15, 1
    %p122 = por %p120, %p121
    %p123 = scmp.ne.s32.totalorder %s112, %s113
    %p124 = scmp.eq.s32.totalorder %s15, 0
    %p125 = por %p123, %p124
    %p126 = scmp.ne.s32.totalorder %s112, %s113
    %p127 = scmp.eq.s32.totalorder %s16, 1
    %p128 = por %p126, %p127
    %p130 = scmp.ne.s32.totalorder %s113, %s129
    %p131 = scmp.eq.s32.totalorder %s16, 0
    %p132 = por %p130, %p131
    %p133 = scmp.le.s32.totalorder 1, %s10
    %p134 = scmp.lt.s32.totalorder %s10, 3
    %p135 = pnand %p133, %p134
    %p136 = pneg %p135
    // Predicated region
    $region9: #{relu_conv_bn.3} parent=5 // pred_check
      _
    $region10: #{relu_conv_bn.3} parent=5 // pred_check_branch
      %138 = sbr.rel (%p135) target = $region12
    $region11: #{relu_conv_bn.3} parent=5 // pred_region
      %s139 = ssub.s32 %s10, 1
      // Predicated region
      $region13: #{relu_conv_bn.3} parent=11 // pred_check
        %p140 = pneg %p57
      $region14: #{relu_conv_bn.3} parent=11 // pred_check_branch
        %142 = sbr.rel (%p140) target = $region16
      $region15: #{relu_conv_bn.3} parent=11 // pred_region
        _
      $region16: #{relu_conv_bn.3} parent=11 // pred_fallthru
        _
      // Predicated region
      $region17: #{relu_conv_bn.3} parent=11 // pred_check
        %p143 = pneg %p78
      $region18: #{relu_conv_bn.3} parent=11 // pred_check_branch
        %145 = sbr.rel (%p143) target = $region20
      $region19: #{relu_conv_bn.3} parent=11 // pred_region
        _
      $region20: #{relu_conv_bn.3} parent=11 // pred_fallthru
        _
      // Predicated region
      $region21: #{relu_conv_bn.3} parent=11 // pred_check
        %p146 = pneg %p99
      $region22: #{relu_conv_bn.3} parent=11 // pred_check_branch
        %148 = sbr.rel (%p146) target = $region24
      $region23: #{relu_conv_bn.3} parent=11 // pred_region
        _
      $region24: #{relu_conv_bn.3} parent=11 // pred_fallthru
        _
    $region12: #{relu_conv_bn.3} parent=5 // pred_fallthru
      _
    %p149 = scmp.lt.s32.totalorder %s10, 2
    // Predicated region
    $region25: #{relu_conv_bn.3} parent=5 // pred_check
      %p150 = pneg %p149
    $region26: #{relu_conv_bn.3} parent=5 // pred_check_branch
      %152 = sbr.rel (%p150) target = $region28
    $region27: #{relu_conv_bn.3} parent=5 // pred_region
      // Predicated region
      $region29: #{relu_conv_bn.3} parent=27 // pred_check
        %p153 = pneg %p30
      $region30: #{relu_conv_bn.3} parent=27 // pred_check_branch
        %155 = sbr.rel (%p153) target = $region32
      $region31: #{relu_conv_bn.3} parent=27 // pred_region
        %p156 = scmp.lt.s32.totalorder %s10, 1
        %s157 = scalar_select %p156, %s10, 1
        %s158 = smul.addr %s157, 32
        %s159 = smul.addr %s158, 8
        %s160 = scalar_lea.vmem %s0, %s159
      $region32: #{relu_conv_bn.3} parent=27 // pred_fallthru
        _
    $region28: #{relu_conv_bn.3} parent=5 // pred_fallthru
      _
    %p161 = scmp.le.s32.totalorder 1, %s10
    %p162 = scmp.lt.s32.totalorder %s10, 3
    %p163 = pnand %p161, %p162
    %p164 = pneg %p163
    // Predicated region
    $region33: #{relu_conv_bn.3} parent=5 // pred_check
      _
    $region34: #{relu_conv_bn.3} parent=5 // pred_check_branch
      %166 = sbr.rel (%p163) target = $region36
    $region35: #{relu_conv_bn.3} parent=5 // pred_region
      %s167 = ssub.s32 %s10, 1
      %p168 = scmp.lt.s32.totalorder %s15, 1
      %s169 = scalar_select %p168, %s15, 1
      %s170 = smul.addr %s169, 32
      %s171 = smul.addr %s170, 8
      %s172 = scalar_lea.vmem %s0, %s171
      %p173 = pneg %p36
      %p174 = pneg %p33
      %p175 = pneg %p57
      %p176 = pneg %p54
      %p177 = pneg %p78
      %p178 = pneg %p75
      %p179 = pneg %p99
      %p180 = pneg %p96
      %p181 = pneg %p125
      %p182 = pneg %p122
      %p183 = scmp.lt.s32.totalorder %s15, 1
      %s184 = scalar_select %p183, %s15, 1
      %s185 = smul.addr %s184, 32
      %s186 = smul.addr %s185, 8
      %s187 = scalar_lea.vmem %s4, %s186
      %p188 = scmp.lt.s32.totalorder %s15, 1
      %s189 = scalar_select %p188, %s15, 1
      %s190 = smul.addr %s189, 32
      %s191 = smul.addr %s190, 8
      %s192 = scalar_lea.vmem %s0, %s191
      %p193 = scmp.lt.s32.totalorder %s15, 1
      %s194 = scalar_select %p193, %s15, 1
      %s195 = smul.addr %s194, 32
      %s196 = smul.addr %s195, 8
      %s197 = scalar_lea.vmem %s4, %s196
      %v198 = vld [vmem:[%s1] sm:$0x1]
      %v199 = vld [vmem:[%s1 + $0x1] sm:$0x1]
      %v200 = vld [vmem:[%s2] sm:$0x1]
      %v201 = vmul.f32 %v200, %v199
      %v202 = vld [vmem:[%s3] sm:$0x1]
      %v203 = vmul.f32 %v198, %v201
      %v204 = vsub.f32 %v202, %v203
      %v205 = vld [vmem:[%s192] sm:$0xff]
      %v206 = vld [vmem:[%s192 + $0x8] sm:$0xff]
      %v207 = vld [vmem:[%s192 + $0x10] sm:$0xff]
      %v208 = vld [vmem:[%s192 + $0x18] sm:$0xff]
      %v209 = vld [vmem:[%s192 + $0x20] sm:$0xff]
      %v210 = vld [vmem:[%s192 + $0x28] sm:$0xff]
      %v211 = vld [vmem:[%s192 + $0x30] sm:$0xff]
      %v212 = vld [vmem:[%s192 + $0x38] sm:$0xff]
      %v213 = vld [vmem:[%s192 + $0x40] sm:$0xff]
      %v214 = vld [vmem:[%s192 + $0x48] sm:$0xff]
      %v215 = vld [vmem:[%s192 + $0x50] sm:$0xff]
      %v216 = vld [vmem:[%s192 + $0x58] sm:$0xff]
      %v217 = vld [vmem:[%s192 + $0x60] sm:$0xff]
      %v218 = vld [vmem:[%s192 + $0x68] sm:$0xff]
      %v219 = vld [vmem:[%s192 + $0x70] sm:$0xff]
      %v220 = vld [vmem:[%s192 + $0x78] sm:$0xff]
      %v221 = vld [vmem:[%s192 + $0x80] sm:$0xff]
      %v222 = vld [vmem:[%s192 + $0x88] sm:$0xff]
      %v223 = vld [vmem:[%s192 + $0x90] sm:$0xff]
      %v224 = vld [vmem:[%s192 + $0x98] sm:$0xff]
      %v225 = vld [vmem:[%s192 + $0xa0] sm:$0xff]
      %v226 = vld [vmem:[%s192 + $0xa8] sm:$0xff]
      %v227 = vld [vmem:[%s192 + $0xb0] sm:$0xff]
      %v228 = vld [vmem:[%s192 + $0xb8] sm:$0xff]
      %v229 = vld [vmem:[%s192 + $0xc0] sm:$0xff]
      %v230 = vld [vmem:[%s192 + $0xc8] sm:$0xff]
      %v231 = vld [vmem:[%s192 + $0xd0] sm:$0xff]
      %v232 = vld [vmem:[%s192 + $0xd8] sm:$0xff]
      %v233 = vld [vmem:[%s192 + $0xe0] sm:$0xff]
      %v234 = vld [vmem:[%s192 + $0xe8] sm:$0xff]
      %v235 = vld [vmem:[%s192 + $0xf0] sm:$0xff]
      %v236 = vld [vmem:[%s192 + $0xf8] sm:$0xff]
      %v238 = vperm.slane %v201, 0
      %v240 = vmul.f32 %v205, %v238
      %v241 = vmul.f32 %v206, %v238
      %v242 = vmul.f32 %v207, %v238
      %v243 = vmul.f32 %v208, %v238
      %v244 = vmul.f32 %v209, %v238
      %v245 = vmul.f32 %v210, %v238
      %v246 = vmul.f32 %v211, %v238
      %v247 = vmul.f32 %v212, %v238
      %v248 = vmul.f32 %v213, %v238
      %v249 = vmul.f32 %v214, %v238
      %v250 = vmul.f32 %v215, %v238
      %v251 = vmul.f32 %v216, %v238
      %v252 = vmul.f32 %v217, %v238
      %v253 = vmul.f32 %v218, %v238
      %v254 = vmul.f32 %v219, %v238
      %v255 = vmul.f32 %v220, %v238
      %v256 = vmul.f32 %v221, %v238
      %v257 = vmul.f32 %v222, %v238
      %v258 = vmul.f32 %v223, %v238
      %v259 = vmul.f32 %v224, %v238
      %v260 = vmul.f32 %v225, %v238
      %v261 = vmul.f32 %v226, %v238
      %v262 = vmul.f32 %v227, %v238
      %v263 = vmul.f32 %v228, %v238
      %v264 = vmul.f32 %v229, %v238
      %v265 = vmul.f32 %v230, %v238
      %v266 = vmul.f32 %v231, %v238
      %v267 = vmul.f32 %v232, %v238
      %v268 = vmul.f32 %v233, %v238
      %v269 = vmul.f32 %v234, %v238
      %v270 = vmul.f32 %v235, %v238
      %v271 = vmul.f32 %v236, %v238
      %v273 = vperm.slane %v204, 0
      %v275 = vadd.f32 %v240, %v273
      %v276 = vadd.f32 %v241, %v273
      %v277 = vadd.f32 %v242, %v273
      %v278 = vadd.f32 %v243, %v273
      %v279 = vadd.f32 %v244, %v273
      %v280 = vadd.f32 %v245, %v273
      %v281 = vadd.f32 %v246, %v273
      %v282 = vadd.f32 %v247, %v273
      %v283 = vadd.f32 %v248, %v273
      %v284 = vadd.f32 %v249, %v273
      %v285 = vadd.f32 %v250, %v273
      %v286 = vadd.f32 %v251, %v273
      %v287 = vadd.f32 %v252, %v273
      %v288 = vadd.f32 %v253, %v273
      %v289 = vadd.f32 %v254, %v273
      %v290 = vadd.f32 %v255, %v273
      %v291 = vadd.f32 %v256, %v273
      %v292 = vadd.f32 %v257, %v273
      %v293 = vadd.f32 %v258, %v273
      %v294 = vadd.f32 %v259, %v273
      %v295 = vadd.f32 %v260, %v273
      %v296 = vadd.f32 %v261, %v273
      %v297 = vadd.f32 %v262, %v273
      %v298 = vadd.f32 %v263, %v273
      %v299 = vadd.f32 %v264, %v273
      %v300 = vadd.f32 %v265, %v273
      %v301 = vadd.f32 %v266, %v273
      %v302 = vadd.f32 %v267, %v273
      %v303 = vadd.f32 %v268, %v273
      %v304 = vadd.f32 %v269, %v273
      %v305 = vadd.f32 %v270, %v273
      %v306 = vadd.f32 %v271, %v273
      %307 = vst [vmem:[%s197] sm:$0xff] %v275
      %308 = vst [vmem:[%s197 + $0x8] sm:$0xff] %v276
      %309 = vst [vmem:[%s197 + $0x10] sm:$0xff] %v277
      %310 = vst [vmem:[%s197 + $0x18] sm:$0xff] %v278
      %311 = vst [vmem:[%s197 + $0x20] sm:$0xff] %v279
      %312 = vst [vmem:[%s197 + $0x28] sm:$0xff] %v280
      %313 = vst [vmem:[%s197 + $0x30] sm:$0xff] %v281
      %314 = vst [vmem:[%s197 + $0x38] sm:$0xff] %v282
      %315 = vst [vmem:[%s197 + $0x40] sm:$0xff] %v283
      %316 = vst [vmem:[%s197 + $0x48] sm:$0xff] %v284
      %317 = vst [vmem:[%s197 + $0x50] sm:$0xff] %v285
      %318 = vst [vmem:[%s197 + $0x58] sm:$0xff] %v286
      %319 = vst [vmem:[%s197 + $0x60] sm:$0xff] %v287
      %320 = vst [vmem:[%s197 + $0x68] sm:$0xff] %v288
      %321 = vst [vmem:[%s197 + $0x70] sm:$0xff] %v289
      %322 = vst [vmem:[%s197 + $0x78] sm:$0xff] %v290
      %323 = vst [vmem:[%s197 + $0x80] sm:$0xff] %v291
      %324 = vst [vmem:[%s197 + $0x88] sm:$0xff] %v292
      %325 = vst [vmem:[%s197 + $0x90] sm:$0xff] %v293
      %326 = vst [vmem:[%s197 + $0x98] sm:$0xff] %v294
      %327 = vst [vmem:[%s197 + $0xa0] sm:$0xff] %v295
      %328 = vst [vmem:[%s197 + $0xa8] sm:$0xff] %v296
      %329 = vst [vmem:[%s197 + $0xb0] sm:$0xff] %v297
      %330 = vst [vmem:[%s197 + $0xb8] sm:$0xff] %v298
      %331 = vst [vmem:[%s197 + $0xc0] sm:$0xff] %v299
      %332 = vst [vmem:[%s197 + $0xc8] sm:$0xff] %v300
      %333 = vst [vmem:[%s197 + $0xd0] sm:$0xff] %v301
      %334 = vst [vmem:[%s197 + $0xd8] sm:$0xff] %v302
      %335 = vst [vmem:[%s197 + $0xe0] sm:$0xff] %v303
      %336 = vst [vmem:[%s197 + $0xe8] sm:$0xff] %v304
      %337 = vst [vmem:[%s197 + $0xf0] sm:$0xff] %v305
      %338 = vst [vmem:[%s197 + $0xf8] sm:$0xff] %v306
      %p339 = scmp.lt.s32.totalorder %s15, 1
      %s340 = scalar_select %p339, %s15, 1
      %s341 = smul.addr %s340, 32
      %s342 = smul.addr %s341, 8
      %s343 = scalar_lea.vmem %s4, %s342
      // Predicated region
      $region37: #{relu_conv_bn.3} parent=35 // pred_check
        %p344 = pneg %p122
      $region38: #{relu_conv_bn.3} parent=35 // pred_check_branch
        %346 = sbr.rel (%p344) target = $region40
      $region39: #{relu_conv_bn.3} parent=35 // pred_region
        _
      $region40: #{relu_conv_bn.3} parent=35 // pred_fallthru
        _
    $region36: #{relu_conv_bn.3} parent=5 // pred_fallthru
      _
    %p347 = scmp.le.s32.totalorder 2, %s10
    // Predicated region
    $region41: #{relu_conv_bn.3} parent=5 // pred_check
      %p348 = pneg %p347
    $region42: #{relu_conv_bn.3} parent=5 // pred_check_branch
      %350 = sbr.rel (%p348) target = $region44
    $region43: #{relu_conv_bn.3} parent=5 // pred_region
      %s351 = ssub.s32 %s10, 2
      // Predicated region
      $region45: #{relu_conv_bn.3} parent=43 // pred_check
        %p352 = pneg %p128
      $region46: #{relu_conv_bn.3} parent=43 // pred_check_branch
        %354 = sbr.rel (%p352) target = $region48
      $region47: #{relu_conv_bn.3} parent=43 // pred_region
        %p355 = scmp.lt.s32.totalorder %s16, 1
        %s356 = scalar_select %p355, %s16, 1
        %s357 = smul.addr %s356, 32
        %s358 = smul.addr %s357, 8
        %s359 = scalar_lea.vmem %s4, %s358
      $region48: #{relu_conv_bn.3} parent=43 // pred_fallthru
        _
    $region44: #{relu_conv_bn.3} parent=5 // pred_fallthru
      _
  $region6: #{relu_conv_bn.3} parent=0 // loop_footer
    %s14 = sadd.s32 1, %s10
  $region7: #{relu_conv_bn.3} parent=0 // loop_footer_branch
    %9 = sbr.rel target = $region3
  $region8: #{relu_conv_bn.3} parent=0 // loop_exit
    _

// kernel: relu_conv_bn.2
$region0: #{relu_conv_bn.2}
  #allocation0 [shape = 'u32[]', space=smem, size = 0x4, offset = 0x4, fixed_abs, tag = 'smem constant byte address 0x4 - core index']
  #allocation1 [shape = 'u32[72,128]{1,0:T(1,128)}', space=vmem, size = 0x9000, scoped, tag = 'internal scratch']
  #allocation2 [shape = 'f32[2,128]{1,0:T(2,128)}', space=vmem, size = 0x400, scoped, tag = 'scratch operand']
  %s0 = inlined_call_operand.vmem [shape: bf16[2,18,18,16], index: 0, kind: input, shape index: {}]
  %s1 = inlined_call_operand.vmem [shape: bf16[3,3,16,128], index: 1, kind: input, shape index: {}]
  %s2 = inlined_call_operand.vmem [shape: f32[2,256,128], index: 2, kind: output, shape index: {0}]
  %s3 = inlined_call_operand.vmem [shape: f32[2,128], index: 3, kind: output, shape index: {1}]
  %4 = xla_tuple %s2, %s3
  %s5 = sld [smem:[#allocation0]]
  $region57: #{relu_conv_bn.2} parent=0
    _
  %s7 = ssub.s32 1, %s5
  %s8 = scalar_select 0, %s7, %s5
  loop: start=0, step=1, limit=4
  $region2: #{relu_conv_bn.2} parent=0 // loop_pre_header
    _
  $region3: #{relu_conv_bn.2} parent=0 // loop_header
    %s10 = sphi 0, %s14
    %p11 = scmp.ge.s32.totalorder %s10, 4
    %s20 = sphi 0, %s22
    %s23 = sphi 0, %s20
    %s24 = sphi 0, %s23
    %s40 = sphi 0, %s24
    %s44 = sphi 0, %s44
    %s46 = sphi 0, %s44
    %s47 = sphi 0, %s46
    %s61 = sphi 0, %s47
    %s67 = sphi 0, %s69
    %s70 = sphi 0, %s67
    %s71 = sphi 0, %s70
    %s87 = sphi 0, %s71
    %s91 = sphi 0, %s91
    %s93 = sphi 0, %s91
    %s94 = sphi 0, %s93
    %s108 = sphi 0, %s94
  $region4: #{relu_conv_bn.2} parent=0 // loop_header_branch
    %13 = sbr.rel (%p11) target = $region8
  $region5: #{relu_conv_bn.2} parent=0 // loop_body
    %s15 = ssub.s32 %s10, 1
    %s16 = ssub.s32 %s10, 2
    %s17 = sadd.s32 %s10, 1
    %s18 = ssub.s32 %s10, %s17
    %p19 = scmp.eq.s32.totalorder %s18, 0
    %s21 = sadd.s32 %s20, 1
    %s22 = scalar_select %p19, %s20, %s21
    %p25 = pneg %p19
    %p26 = scmp.eq.s32.totalorder %s10, 1
    %p27 = por %p25, %p26
    %p28 = scmp.ne.s32.totalorder %s20, %s23
    %p29 = scmp.eq.s32.totalorder %s10, 0
    %p30 = por %p28, %p29
    %p31 = scmp.ne.s32.totalorder %s20, %s23
    %p32 = scmp.eq.s32.totalorder %s15, 1
    %p33 = por %p31, %p32
    %p34 = scmp.ne.s32.totalorder %s23, %s24
    %p35 = scmp.eq.s32.totalorder %s15, 0
    %p36 = por %p34, %p35
    %p37 = scmp.ne.s32.totalorder %s23, %s24
    %p38 = scmp.eq.s32.totalorder %s16, 1
    %p39 = por %p37, %p38
    %p41 = scmp.ne.s32.totalorder %s24, %s40
    %p42 = scmp.eq.s32.totalorder %s16, 0
    %p43 = por %p41, %p42
    %s45 = sadd.s32 %s44, 1
    %p48 = scmp.eq.s32.totalorder %s10, 1
    %p49 = scmp.ne.s32.totalorder %s44, %s46
    %p50 = scmp.eq.s32.totalorder %s10, 0
    %p51 = por %p49, %p50
    %p52 = scmp.ne.s32.totalorder %s44, %s46
    %p53 = scmp.eq.s32.totalorder %s15, 1
    %p54 = por %p52, %p53
    %p55 = scmp.ne.s32.totalorder %s46, %s47
    %p56 = scmp.eq.s32.totalorder %s15, 0
    %p57 = por %p55, %p56
    %p58 = scmp.ne.s32.totalorder %s46, %s47
    %p59 = scmp.eq.s32.totalorder %s16, 1
    %p60 = por %p58, %p59
    %p62 = scmp.ne.s32.totalorder %s47, %s61
    %p63 = scmp.eq.s32.totalorder %s16, 0
    %p64 = por %p62, %p63
    %s65 = ssub.s32 %s10, %s17
    %p66 = scmp.eq.s32.totalorder %s65, 0
    %s68 = sadd.s32 %s67, 1
    %s69 = scalar_select %p66, %s67, %s68
    %p72 = pneg %p66
    %p73 = scmp.eq.s32.totalorder %s10, 1
    %p74 = por %p72, %p73
    %p75 = scmp.ne.s32.totalorder %s67, %s70
    %p76 = scmp.eq.s32.totalorder %s10, 0
    %p77 = por %p75, %p76
    %p78 = scmp.ne.s32.totalorder %s67, %s70
    %p79 = scmp.eq.s32.totalorder %s15, 1
    %p80 = por %p78, %p79
    %p81 = scmp.ne.s32.totalorder %s70, %s71
    %p82 = scmp.eq.s32.totalorder %s15, 0
    %p83 = por %p81, %p82
    %p84 = scmp.ne.s32.totalorder %s70, %s71
    %p85 = scmp.eq.s32.totalorder %s16, 1
    %p86 = por %p84, %p85
    %p88 = scmp.ne.s32.totalorder %s71, %s87
    %p89 = scmp.eq.s32.totalorder %s16, 0
    %p90 = por %p88, %p89
    %s92 = sadd.s32 %s91, 1
    %p95 = scmp.eq.s32.totalorder %s10, 1
    %p96 = scmp.ne.s32.totalorder %s91, %s93
    %p97 = scmp.eq.s32.totalorder %s10, 0
    %p98 = por %p96, %p97
    %p99 = scmp.ne.s32.totalorder %s91, %s93
    %p100 = scmp.eq.s32.totalorder %s15, 1
    %p101 = por %p99, %p100
    %p102 = scmp.ne.s32.totalorder %s93, %s94
    %p103 = scmp.eq.s32.totalorder %s15, 0
    %p104 = por %p102, %p103
    %p105 = scmp.ne.s32.totalorder %s93, %s94
    %p106 = scmp.eq.s32.totalorder %s16, 1
    %p107 = por %p105, %p106
    %p109 = scmp.ne.s32.totalorder %s94, %s108
    %p110 = scmp.eq.s32.totalorder %s16, 0
    %p111 = por %p109, %p110
    %p112 = scmp.le.s32.totalorder 1, %s10
    %p113 = scmp.lt.s32.totalorder %s10, 3
    %p114 = pnand %p112, %p113
    %p115 = pneg %p114
    // Predicated region
    $region9: #{relu_conv_bn.2} parent=5 // pred_check
      _
    $region10: #{relu_conv_bn.2} parent=5 // pred_check_branch
      %117 = sbr.rel (%p114) target = $region12
    $region11: #{relu_conv_bn.2} parent=5 // pred_region
      %s118 = ssub.s32 %s10, 1
      // Predicated region
      $region13: #{relu_conv_bn.2} parent=11 // pred_check
        %p119 = pneg %p57
      $region14: #{relu_conv_bn.2} parent=11 // pred_check_branch
        %121 = sbr.rel (%p119) target = $region16
      $region15: #{relu_conv_bn.2} parent=11 // pred_region
        _
      $region16: #{relu_conv_bn.2} parent=11 // pred_fallthru
        _
    $region12: #{relu_conv_bn.2} parent=5 // pred_fallthru
      _
    %p122 = scmp.lt.s32.totalorder %s10, 2
    // Predicated region
    $region17: #{relu_conv_bn.2} parent=5 // pred_check
      %p123 = pneg %p122
    $region18: #{relu_conv_bn.2} parent=5 // pred_check_branch
      %125 = sbr.rel (%p123) target = $region20
    $region19: #{relu_conv_bn.2} parent=5 // pred_region
      // Predicated region
      $region21: #{relu_conv_bn.2} parent=19 // pred_check
        %p126 = pneg %p30
      $region22: #{relu_conv_bn.2} parent=19 // pred_check_branch
        %128 = sbr.rel (%p126) target = $region24
      $region23: #{relu_conv_bn.2} parent=19 // pred_region
        %p129 = scmp.lt.s32.totalorder %s10, 1
        %s130 = scalar_select %p129, %s10, 1
        %s131 = smul.addr %s130, 54
        %s132 = smul.addr %s131, 4
        %s133 = scalar_lea.vmem %s0, %s132
      $region24: #{relu_conv_bn.2} parent=19 // pred_fallthru
        _
    $region20: #{relu_conv_bn.2} parent=5 // pred_fallthru
      _
    %p134 = scmp.le.s32.totalorder 1, %s10
    %p135 = scmp.lt.s32.totalorder %s10, 3
    %p136 = pnand %p134, %p135
    %p137 = pneg %p136
    // Predicated region
    $region25: #{relu_conv_bn.2} parent=5 // pred_check
      _
    $region26: #{relu_conv_bn.2} parent=5 // pred_check_branch
      %139 = sbr.rel (%p136) target = $region28
    $region27: #{relu_conv_bn.2} parent=5 // pred_region
      %s140 = ssub.s32 %s10, 1
      %p141 = scmp.lt.s32.totalorder %s15, 1
      %s142 = scalar_select %p141, %s15, 1
      %s143 = smul.addr %s142, 54
      %s144 = smul.addr %s143, 4
      %s145 = scalar_lea.vmem %s0, %s144
      %p146 = pneg %p36
      %p147 = pneg %p33
      %p148 = pneg %p57
      %p149 = pneg %p54
      %p150 = pneg %p83
      %p151 = pneg %p80
      %p152 = scmp.lt.s32.totalorder %s15, 1
      %s153 = scalar_select %p152, %s15, 1
      %s154 = smul.addr %s153, 32
      %s155 = smul.addr %s154, 8
      %s156 = scalar_lea.vmem %s2, %s155
      %p157 = pneg %p104
      %p158 = pneg %p101
      %p159 = scmp.lt.s32.totalorder %s15, 1
      %s160 = scalar_select %p159, %s15, 1
      %s161 = smul.addr %s160, 54
      %s162 = smul.addr %s161, 4
      %s163 = scalar_lea.vmem %s0, %s162
      %p164 = scmp.lt.s32.totalorder %s15, 1
      %s165 = scalar_select %p164, %s15, 1
      %s166 = smul.addr %s165, 32
      %s167 = smul.addr %s166, 8
      %s168 = scalar_lea.vmem %s2, %s167
      %p170 = scmp.eq.s32.totalorder %s15, 0
      // Predicated region
      $region29: #{relu_conv_bn.2} parent=27 // pred_check
        %p171 = pneg %p170
      $region30: #{relu_conv_bn.2} parent=27 // pred_check_branch
        %173 = sbr.rel (%p171) target = $region32
      $region31: #{relu_conv_bn.2} parent=27 // pred_region
        %174 = vst [vmem:[#allocation2] sm:$0x3] 0.0
      $region32: #{relu_conv_bn.2} parent=27 // pred_fallthru
        _
      %v175 = vld [vmem:[%s163] sm:$0xf]
      %v176 = vld [vmem:[%s163 + $0x4] sm:$0xf]
      %v177 = vld [vmem:[%s163 + $0x8] sm:$0x1]
      %v178 = vld [vmem:[%s163 + $0xc] sm:$0xf]
      %v179 = vld [vmem:[%s163 + $0x10] sm:$0xf]
      %v180 = vld [vmem:[%s163 + $0x14] sm:$0x1]
      %v181 = vld [vmem:[%s163 + $0x18] sm:$0xf]
      %v182 = vld [vmem:[%s163 + $0x1c] sm:$0xf]
      %v183 = vld [vmem:[%s163 + $0x20] sm:$0x1]
      %v184 = vld [vmem:[%s163 + $0x24] sm:$0xf]
      %v185 = vld [vmem:[%s163 + $0x28] sm:$0xf]
      %v186 = vld [vmem:[%s163 + $0x2c] sm:$0x1]
      %v187 = vld [vmem:[%s163 + $0x30] sm:$0xf]
      %v188 = vld [vmem:[%s163 + $0x34] sm:$0xf]
      %v189 = vld [vmem:[%s163 + $0x38] sm:$0x1]
      %v190 = vld [vmem:[%s163 + $0x3c] sm:$0xf]
      %v191 = vld [vmem:[%s163 + $0x40] sm:$0xf]
      %v192 = vld [vmem:[%s163 + $0x44] sm:$0x1]
      %v193 = vld [vmem:[%s163 + $0x48] sm:$0xf]
      %v194 = vld [vmem:[%s163 + $0x4c] sm:$0xf]
      %v195 = vld [vmem:[%s163 + $0x50] sm:$0x1]
      %v196 = vld [vmem:[%s163 + $0x54] sm:$0xf]
      %v197 = vld [vmem:[%s163 + $0x58] sm:$0xf]
      %v198 = vld [vmem:[%s163 + $0x5c] sm:$0x1]
      %v199 = vld [vmem:[%s163 + $0x60] sm:$0xf]
      %v200 = vld [vmem:[%s163 + $0x64] sm:$0xf]
      %v201 = vld [vmem:[%s163 + $0x68] sm:$0x1]
      %v202 = vld [vmem:[%s163 + $0x6c] sm:$0xf]
      %v203 = vld [vmem:[%s163 + $0x70] sm:$0xf]
      %v204 = vld [vmem:[%s163 + $0x74] sm:$0x1]
      %v205 = vld [vmem:[%s163 + $0x78] sm:$0xf]
      %v206 = vld [vmem:[%s163 + $0x7c] sm:$0xf]
      %v207 = vld [vmem:[%s163 + $0x80] sm:$0x1]
      %v208 = vld [vmem:[%s163 + $0x84] sm:$0xf]
      %v209 = vld [vmem:[%s163 + $0x88] sm:$0xf]
      %v210 = vld [vmem:[%s163 + $0x8c] sm:$0x1]
      %v211 = vld [vmem:[%s163 + $0x90] sm:$0xf]
      %v212 = vld [vmem:[%s163 + $0x94] sm:$0xf]
      %v213 = vld [vmem:[%s163 + $0x98] sm:$0x1]
      %v214 = vld [vmem:[%s163 + $0x9c] sm:$0xf]
      %v215 = vld [vmem:[%s163 + $0xa0] sm:$0xf]
      %v216 = vld [vmem:[%s163 + $0xa4] sm:$0x1]
      %v217 = vld [vmem:[%s163 + $0xa8] sm:$0xf]
      %v218 = vld [vmem:[%s163 + $0xac] sm:$0xf]
      %v219 = vld [vmem:[%s163 + $0xb0] sm:$0x1]
      %v220 = vld [vmem:[%s163 + $0xb4] sm:$0xf]
      %v221 = vld [vmem:[%s163 + $0xb8] sm:$0xf]
      %v222 = vld [vmem:[%s163 + $0xbc] sm:$0x1]
      %v223 = vld [vmem:[%s163 + $0xc0] sm:$0xf]
      %v224 = vld [vmem:[%s163 + $0xc4] sm:$0xf]
      %v225 = vld [vmem:[%s163 + $0xc8] sm:$0x1]
      %v226 = vld [vmem:[%s163 + $0xcc] sm:$0xf]
      %v227 = vld [vmem:[%s163 + $0xd0] sm:$0xf]
      %v228 = vld [vmem:[%s163 + $0xd4] sm:$0x1]
      %v229 = vunpack.c.l.bf16 %v175
      %v230 = vunpack.c.l.bf16 %v176
      %v231 = vunpack.c.l.bf16 %v177
      %v232 = vunpack.c.l.bf16 %v178
      %v233 = vunpack.c.l.bf16 %v179
      %v234 = vunpack.c.l.bf16 %v180
      %v235 = vunpack.c.l.bf16 %v181
      %v236 = vunpack.c.l.bf16 %v182
      %v237 = vunpack.c.l.bf16 %v183
      %v238 = vunpack.c.l.bf16 %v184
      %v239 = vunpack.c.l.bf16 %v185
      %v240 = vunpack.c.l.bf16 %v186
      %v241 = vunpack.c.l.bf16 %v187
      %v242 = vunpack.c.l.bf16 %v188
      %v243 = vunpack.c.l.bf16 %v189
      %v244 = vunpack.c.l.bf16 %v190
      %v245 = vunpack.c.l.bf16 %v191
      %v246 = vunpack.c.l.bf16 %v192
      %v247 = vunpack.c.l.bf16 %v193
      %v248 = vunpack.c.l.bf16 %v194
      %v249 = vunpack.c.l.bf16 %v195
      %v250 = vunpack.c.l.bf16 %v196
      %v251 = vunpack.c.l.bf16 %v197
      %v252 = vunpack.c.l.bf16 %v198
      %v253 = vunpack.c.l.bf16 %v199
      %v254 = vunpack.c.l.bf16 %v200
      %v255 = vunpack.c.l.bf16 %v201
      %v256 = vunpack.c.l.bf16 %v202
      %v257 = vunpack.c.l.bf16 %v203
      %v258 = vunpack.c.l.bf16 %v204
      %v259 = vunpack.c.l.bf16 %v205
      %v260 = vunpack.c.l.bf16 %v206
      %v261 = vunpack.c.l.bf16 %v207
      %v262 = vunpack.c.l.bf16 %v208
      %v263 = vunpack.c.l.bf16 %v209
      %v264 = vunpack.c.l.bf16 %v210
      %v265 = vunpack.c.l.bf16 %v211
      %v266 = vunpack.c.l.bf16 %v212
      %v267 = vunpack.c.l.bf16 %v213
      %v268 = vunpack.c.l.bf16 %v214
      %v269 = vunpack.c.l.bf16 %v215
      %v270 = vunpack.c.l.bf16 %v216
      %v271 = vunpack.c.l.bf16 %v217
      %v272 = vunpack.c.l.bf16 %v218
      %v273 = vunpack.c.l.bf16 %v219
      %v274 = vunpack.c.l.bf16 %v220
      %v275 = vunpack.c.l.bf16 %v221
      %v276 = vunpack.c.l.bf16 %v222
      %v277 = vunpack.c.l.bf16 %v223
      %v278 = vunpack.c.l.bf16 %v224
      %v279 = vunpack.c.l.bf16 %v225
      %v280 = vunpack.c.l.bf16 %v226
      %v281 = vunpack.c.l.bf16 %v227
      %v282 = vunpack.c.l.bf16 %v228
      %v283 = vmax.f32 %v229, 0.0
      %v284 = vmax.f32 %v230, 0.0
      %v285 = vmax.f32 %v231, 0.0
      %v286 = vmax.f32 %v232, 0.0
      %v287 = vmax.f32 %v233, 0.0
      %v288 = vmax.f32 %v234, 0.0
      %v289 = vmax.f32 %v235, 0.0
      %v290 = vmax.f32 %v236, 0.0
      %v291 = vmax.f32 %v237, 0.0
      %v292 = vmax.f32 %v238, 0.0
      %v293 = vmax.f32 %v239, 0.0
      %v294 = vmax.f32 %v240, 0.0
      %v295 = vmax.f32 %v241, 0.0
      %v296 = vmax.f32 %v242, 0.0
      %v297 = vmax.f32 %v243, 0.0
      %v298 = vmax.f32 %v244, 0.0
      %v299 = vmax.f32 %v245, 0.0
      %v300 = vmax.f32 %v246, 0.0
      %v301 = vmax.f32 %v247, 0.0
      %v302 = vmax.f32 %v248, 0.0
      %v303 = vmax.f32 %v249, 0.0
      %v304 = vmax.f32 %v250, 0.0
      %v305 = vmax.f32 %v251, 0.0
      %v306 = vmax.f32 %v252, 0.0
      %v307 = vmax.f32 %v253, 0.0
      %v308 = vmax.f32 %v254, 0.0
      %v309 = vmax.f32 %v255, 0.0
      %v310 = vmax.f32 %v256, 0.0
      %v311 = vmax.f32 %v257, 0.0
      %v312 = vmax.f32 %v258, 0.0
      %v313 = vmax.f32 %v259, 0.0
      %v314 = vmax.f32 %v260, 0.0
      %v315 = vmax.f32 %v261, 0.0
      %v316 = vmax.f32 %v262, 0.0
      %v317 = vmax.f32 %v263, 0.0
      %v318 = vmax.f32 %v264, 0.0
      %v319 = vmax.f32 %v265, 0.0
      %v320 = vmax.f32 %v266, 0.0
      %v321 = vmax.f32 %v267, 0.0
      %v322 = vmax.f32 %v268, 0.0
      %v323 = vmax.f32 %v269, 0.0
      %v324 = vmax.f32 %v270, 0.0
      %v325 = vmax.f32 %v271, 0.0
      %v326 = vmax.f32 %v272, 0.0
      %v327 = vmax.f32 %v273, 0.0
      %v328 = vmax.f32 %v274, 0.0
      %v329 = vmax.f32 %v275, 0.0
      %v330 = vmax.f32 %v276, 0.0
      %v331 = vmax.f32 %v277, 0.0
      %v332 = vmax.f32 %v278, 0.0
      %v333 = vmax.f32 %v279, 0.0
      %v334 = vmax.f32 %v280, 0.0
      %v335 = vmax.f32 %v281, 0.0
      %v336 = vmax.f32 %v282, 0.0
      %v337 = vpack.c.bf16 %v284, %v283
      %v338 = vpack.c.bf16 %v287, %v286
      %v339 = vpack.c.bf16 %v290, %v289
      %v340 = vpack.c.bf16 %v293, %v292
      %v341 = vpack.c.bf16 %v296, %v295
      %v342 = vpack.c.bf16 %v299, %v298
      %v343 = vpack.c.bf16 %v302, %v301
      %v344 = vpack.c.bf16 %v305, %v304
      %v345 = vpack.c.bf16 %v308, %v307
      %v346 = vpack.c.bf16 %v311, %v310
      %v347 = vpack.c.bf16 %v314, %v313
      %v348 = vpack.c.bf16 %v317, %v316
      %v349 = vpack.c.bf16 %v320, %v319
      %v350 = vpack.c.bf16 %v323, %v322
      %v351 = vpack.c.bf16 %v326, %v325
      %v352 = vpack.c.bf16 %v329, %v328
      %v353 = vld [vmem:[%s1] sm:$0xf]
      %v354 = vld [vmem:[%s1 + $0x4] sm:$0xf]
      %vm403 = vcmask 1046528
      %v404 = vrot.slane %v283, 1
      %v405 = vrot.slane %v284, 1
      %v406 = vsel %vm403, %v404, %v405
      %v407 = vrot.slane %v285, 1
      %v408 = vsel %vm403, %v405, %v407
      %v409 = vrot.slane %v286, 1
      %v410 = vrot.slane %v287, 1
      %v411 = vsel %vm403, %v409, %v410
      %v412 = vrot.slane %v288, 1
      %v413 = vsel %vm403, %v410, %v412
      %v414 = vrot.slane %v289, 1
      %v415 = vrot.slane %v290, 1
      %v416 = vsel %vm403, %v414, %v415
      %v417 = vrot.slane %v291, 1
      %v418 = vsel %vm403, %v415, %v417
      %v419 = vrot.slane %v292, 1
      %v420 = vrot.slane %v293, 1
      %v421 = vsel %vm403, %v419, %v420
      %v422 = vrot.slane %v294, 1
      %v423 = vsel %vm403, %v420, %v422
      %v424 = vrot.slane %v295, 1
      %v425 = vrot.slane %v296, 1
      %v426 = vsel %vm403, %v424, %v425
      %v427 = vrot.slane %v297, 1
      %v428 = vsel %vm403, %v425, %v427
      %v429 = vrot.slane %v298, 1
      %v430 = vrot.slane %v299, 1
      %v431 = vsel %vm403, %v429, %v430
      %v432 = vrot.slane %v300, 1
      %v433 = vsel %vm403, %v430, %v432
      %v434 = vrot.slane %v301, 1
      %v435 = vrot.slane %v302, 1
      %v436 = vsel %vm403, %v434, %v435
      %v437 = vrot.slane %v303, 1
      %v438 = vsel %vm403, %v435, %v437
      %v439 = vrot.slane %v304, 1
      %v440 = vrot.slane %v305, 1
      %v441 = vsel %vm403, %v439, %v440
      %v442 = vrot.slane %v306, 1
      %v443 = vsel %vm403, %v440, %v442
      %v444 = vrot.slane %v307, 1
      %v445 = vrot.slane %v308, 1
      %v446 = vsel %vm403, %v444, %v445
      %v447 = vrot.slane %v309, 1
      %v448 = vsel %vm403, %v445, %v447
      %v449 = vrot.slane %v310, 1
      %v450 = vrot.slane %v311, 1
      %v451 = vsel %vm403, %v449, %v450
      %v452 = vrot.slane %v312, 1
      %v453 = vsel %vm403, %v450, %v452
      %v454 = vrot.slane %v313, 1
      %v455 = vrot.slane %v314, 1
      %v456 = vsel %vm403, %v454, %v455
      %v457 = vrot.slane %v315, 1
      %v458 = vsel %vm403, %v455, %v457
      %v459 = vrot.slane %v316, 1
      %v460 = vrot.slane %v317, 1
      %v461 = vsel %vm403, %v459, %v460
      %v462 = vrot.slane %v318, 1
      %v463 = vsel %vm403, %v460, %v462
      %v464 = vrot.slane %v319, 1
      %v465 = vrot.slane %v320, 1
      %v466 = vsel %vm403, %v464, %v465
      %v467 = vrot.slane %v321, 1
      %v468 = vsel %vm403, %v465, %v467
      %v469 = vrot.slane %v322, 1
      %v470 = vrot.slane %v323, 1
      %v471 = vsel %vm403, %v469, %v470
      %v472 = vrot.slane %v324, 1
      %v473 = vsel %vm403, %v470, %v472
      %v474 = vrot.slane %v325, 1
      %v475 = vrot.slane %v326, 1
      %v476 = vsel %vm403, %v474, %v475
      %v477 = vrot.slane %v327, 1
      %v478 = vsel %vm403, %v475, %v477
      %v479 = vrot.slane %v328, 1
      %v480 = vrot.slane %v329, 1
      %v481 = vsel %vm403, %v479, %v480
      %v482 = vrot.slane %v330, 1
      %v483 = vsel %vm403, %v480, %v482
      %v516 = vpack.c.bf16 %v408, %v406
      %v517 = vpack.c.bf16 %v413, %v411
      %v518 = vpack.c.bf16 %v418, %v416
      %v519 = vpack.c.bf16 %v423, %v421
      %v520 = vpack.c.bf16 %v428, %v426
      %v521 = vpack.c.bf16 %v433, %v431
      %v522 = vpack.c.bf16 %v438, %v436
      %v523 = vpack.c.bf16 %v443, %v441
      %v524 = vpack.c.bf16 %v448, %v446
      %v525 = vpack.c.bf16 %v453, %v451
      %v526 = vpack.c.bf16 %v458, %v456
      %v527 = vpack.c.bf16 %v463, %v461
      %v528 = vpack.c.bf16 %v468, %v466
      %v529 = vpack.c.bf16 %v473, %v471
      %v530 = vpack.c.bf16 %v478, %v476
      %v531 = vpack.c.bf16 %v483, %v481
      %s532 = scalar_lea.vmem %s1, 8
      %v533 = vld [vmem:[%s532] sm:$0xf]
      %v534 = vld [vmem:[%s532 + $0x4] sm:$0xf]
      %v537 = vunpack.c.l.b16 %v533
      %v538 = vunpack.c.l.b16 %v534
      %v539 = vpack.c.b16 %v538, %v537
      %vm541 = vcmask 130048
      %v543 = vsel %vm541, %v516, 0
      %v546 = vsel %vm541, %v517, 0
      %v549 = vsel %vm541, %v518, 0
      %v552 = vsel %vm541, %v519, 0
      %v555 = vsel %vm541, %v520, 0
      %v558 = vsel %vm541, %v521, 0
      %v561 = vsel %vm541, %v522, 0
      %v564 = vsel %vm541, %v523, 0
      %v567 = vsel %vm541, %v524, 0
      %v570 = vsel %vm541, %v525, 0
      %v573 = vsel %vm541, %v526, 0
      %v576 = vsel %vm541, %v527, 0
      %v579 = vsel %vm541, %v528, 0
      %v582 = vsel %vm541, %v529, 0
      %v585 = vsel %vm541, %v530, 0
      %v588 = vsel %vm541, %v531, 0
      %590 = vmatpush.bf16.msra.mxu0 0
      %591 = vmatpush.bf16.msra.mxu0 0
      %592 = vmatpush.bf16.msra.mxu0 0
      %593 = vmatpush.bf16.msra.mxu0 0
      %594 = vmatpush.bf16.msra.mxu0 0
      %595 = vmatpush.bf16.msra.mxu0 0
      %596 = vmatpush.bf16.msra.mxu0 0
      %597 = vmatpush.bf16.msra.mxu0 %v539
      %598 = vmatmul.bf16.gmra.mxu0 %v543
      %v599 = vpop.f32.mrf.mxu0
      %v600 = vadd.f32 0.0, %v599
      %v601 = vpop.f32.mrf.mxu0
      %v602 = vadd.f32 0.0, %v601
      %603 = vmatmul.bf16.gmra.mxu0 %v546
      %v604 = vpop.f32.mrf.mxu0
      %v605 = vadd.f32 0.0, %v604
      %v606 = vpop.f32.mrf.mxu0
      %v607 = vadd.f32 0.0, %v606
      %608 = vmatmul.bf16.gmra.mxu0 %v549
      %v609 = vpop.f32.mrf.mxu0
      %v610 = vadd.f32 0.0, %v609
      %v611 = vpop.f32.mrf.mxu0
      %v612 = vadd.f32 0.0, %v611
      %613 = vmatmul.bf16.gmra.mxu0 %v552
      %v614 = vpop.f32.mrf.mxu0
      %v615 = vadd.f32 0.0, %v614
      %v616 = vpop.f32.mrf.mxu0
      %v617 = vadd.f32 0.0, %v616
      %618 = vmatmul.bf16.gmra.mxu0 %v555
      %v619 = vpop.f32.mrf.mxu0
      %v620 = vadd.f32 0.0, %v619
      %v621 = vpop.f32.mrf.mxu0
      %v622 = vadd.f32 0.0, %v621
      %623 = vmatmul.bf16.gmra.mxu0 %v558
      %v624 = vpop.f32.mrf.mxu0
      %v625 = vadd.f32 0.0, %v624
      %v626 = vpop.f32.mrf.mxu0
      %v627 = vadd.f32 0.0, %v626
      %628 = vmatmul.bf16.gmra.mxu0 %v561
      %v629 = vpop.f32.mrf.mxu0
      %v630 = vadd.f32 0.0, %v629
      %v631 = vpop.f32.mrf.mxu0
      %v632 = vadd.f32 0.0, %v631
      %633 = vmatmul.bf16.gmra.mxu0 %v564
      %v634 = vpop.f32.mrf.mxu0
      %v635 = vadd.f32 0.0, %v634
      %v636 = vpop.f32.mrf.mxu0
      %v637 = vadd.f32 0.0, %v636
      %638 = vmatmul.bf16.gmra.mxu0 %v567
      %v639 = vpop.f32.mrf.mxu0
      %v640 = vadd.f32 0.0, %v639
      %v641 = vpop.f32.mrf.mxu0
      %v642 = vadd.f32 0.0, %v641
      %643 = vmatmul.bf16.gmra.mxu0 %v570
      %v644 = vpop.f32.mrf.mxu0
      %v645 = vadd.f32 0.0, %v644
      %v646 = vpop.f32.mrf.mxu0
      %v647 = vadd.f32 0.0, %v646
      %648 = vmatmul.bf16.gmra.mxu0 %v573
      %v649 = vpop.f32.mrf.mxu0
      %v650 = vadd.f32 0.0, %v649
      %v651 = vpop.f32.mrf.mxu0
      %v652 = vadd.f32 0.0, %v651
      %653 = vmatmul.bf16.gmra.mxu0 %v576
      %v654 = vpop.f32.mrf.mxu0
      %v655 = vadd.f32 0.0, %v654
      %v656 = vpop.f32.mrf.mxu0
      %v657 = vadd.f32 0.0, %v656
      %658 = vmatmul.bf16.gmra.mxu0 %v579
      %v659 = vpop.f32.mrf.mxu0
      %v660 = vadd.f32 0.0, %v659
      %v661 = vpop.f32.mrf.mxu0
      %v662 = vadd.f32 0.0, %v661
      %663 = vmatmul.bf16.gmra.mxu0 %v582
      %v664 = vpop.f32.mrf.mxu0
      %v665 = vadd.f32 0.0, %v664
      %v666 = vpop.f32.mrf.mxu0
      %v667 = vadd.f32 0.0, %v666
      %668 = vmatmul.bf16.gmra.mxu0 %v585
      %v669 = vpop.f32.mrf.mxu0
      %v670 = vadd.f32 0.0, %v669
      %v671 = vpop.f32.mrf.mxu0
      %v672 = vadd.f32 0.0, %v671
      %673 = vmatmul.bf16.gmra.mxu0 %v588
      %v674 = vpop.f32.mrf.mxu0
      %v675 = vadd.f32 0.0, %v674
      %v676 = vpop.f32.mrf.mxu0
      %v677 = vadd.f32 0.0, %v676
      %678 = vdwg.mxu0
      %v681 = vunpack.c.l.b16 %v353
      %v682 = vunpack.c.l.b16 %v354
      %v683 = vpack.c.b16 %v682, %v681
      %v686 = vsel %vm541, %v337, 0
      %v689 = vsel %vm541, %v338, 0
      %v692 = vsel %vm541, %v339, 0
      %v695 = vsel %vm541, %v340, 0
      %v698 = vsel %vm541, %v341, 0
      %v701 = vsel %vm541, %v342, 0
      %v704 = vsel %vm541, %v343, 0
      %v707 = vsel %vm541, %v344, 0
      %v710 = vsel %vm541, %v345, 0
      %v713 = vsel %vm541, %v346, 0
      %v716 = vsel %vm541, %v347, 0
      %v719 = vsel %vm541, %v348, 0
      %v722 = vsel %vm541, %v349, 0
      %v725 = vsel %vm541, %v350, 0
      %v728 = vsel %vm541, %v351, 0
      %v731 = vsel %vm541, %v352, 0
      %733 = vmatpush.bf16.msra.mxu0 0
      %734 = vmatpush.bf16.msra.mxu0 0
      %735 = vmatpush.bf16.msra.mxu0 0
      %736 = vmatpush.bf16.msra.mxu0 0
      %737 = vmatpush.bf16.msra.mxu0 0
      %738 = vmatpush.bf16.msra.mxu0 0
      %739 = vmatpush.bf16.msra.mxu0 0
      %740 = vmatpush.bf16.msra.mxu0 %v683
      %741 = vmatmul.bf16.gmra.mxu0 %v686
      %v742 = vpop.f32.mrf.mxu0
      %v743 = vadd.f32 %v600, %v742
      %v744 = vpop.f32.mrf.mxu0
      %v745 = vadd.f32 %v602, %v744
      %746 = vmatmul.bf16.gmra.mxu0 %v689
      %v747 = vpop.f32.mrf.mxu0
      %v748 = vadd.f32 %v605, %v747
      %v749 = vpop.f32.mrf.mxu0
      %v750 = vadd.f32 %v607, %v749
      %751 = vmatmul.bf16.gmra.mxu0 %v692
      %v752 = vpop.f32.mrf.mxu0
      %v753 = vadd.f32 %v610, %v752
      %v754 = vpop.f32.mrf.mxu0
      %v755 = vadd.f32 %v612, %v754
      %756 = vmatmul.bf16.gmra.mxu0 %v695
      %v757 = vpop.f32.mrf.mxu0
      %v758 = vadd.f32 %v615, %v757
      %v759 = vpop.f32.mrf.mxu0
      %v760 = vadd.f32 %v617, %v759
      %761 = vmatmul.bf16.gmra.mxu0 %v698
      %v762 = vpop.f32.mrf.mxu0
      %v763 = vadd.f32 %v620, %v762
      %v764 = vpop.f32.mrf.mxu0
      %v765 = vadd.f32 %v622, %v764
      %766 = vmatmul.bf16.gmra.mxu0 %v701
      %v767 = vpop.f32.mrf.mxu0
      %v768 = vadd.f32 %v625, %v767
      %v769 = vpop.f32.mrf.mxu0
      %v770 = vadd.f32 %v627, %v769
      %771 = vmatmul.bf16.gmra.mxu0 %v704
      %v772 = vpop.f32.mrf.mxu0
      %v773 = vadd.f32 %v630, %v772
      %v774 = vpop.f32.mrf.mxu0
      %v775 = vadd.f32 %v632, %v774
      %776 = vmatmul.bf16.gmra.mxu0 %v707
      %v777 = vpop.f32.mrf.mxu0
      %v778 = vadd.f32 %v635, %v777
      %v779 = vpop.f32.mrf.mxu0
      %v780 = vadd.f32 %v637, %v779
      %781 = vmatmul.bf16.gmra.mxu0 %v710
      %v782 = vpop.f32.mrf.mxu0
      %v783 = vadd.f32 %v640, %v782
      %v784 = vpop.f32.mrf.mxu0
      %v785 = vadd.f32 %v642, %v784
      %786 = vmatmul.bf16.gmra.mxu0 %v713
      %v787 = vpop.f32.mrf.mxu0
      %v788 = vadd.f32 %v645, %v787
      %v789 = vpop.f32.mrf.mxu0
      %v790 = vadd.f32 %v647, %v789
      %791 = vmatmul.bf16.gmra.mxu0 %v716
      %v792 = vpop.f32.mrf.mxu0
      %v793 = vadd.f32 %v650, %v792
      %v794 = vpop.f32.mrf.mxu0
      %v795 = vadd.f32 %v652, %v794
      %796 = vmatmul.bf16.gmra.mxu0 %v719
      %v797 = vpop.f32.mrf.mxu0
      %v798 = vadd.f32 %v655, %v797
      %v799 = vpop.f32.mrf.mxu0
      %v800 = vadd.f32 %v657, %v799
      %801 = vmatmul.bf16.gmra.mxu0 %v722
      %v802 = vpop.f32.mrf.mxu0
      %v803 = vadd.f32 %v660, %v802
      %v804 = vpop.f32.mrf.mxu0
      %v805 = vadd.f32 %v662, %v804
      %806 = vmatmul.bf16.gmra.mxu0 %v725
      %v807 = vpop.f32.mrf.mxu0
      %v808 = vadd.f32 %v665, %v807
      %v809 = vpop.f32.mrf.mxu0
      %v810 = vadd.f32 %v667, %v809
      %811 = vmatmul.bf16.gmra.mxu0 %v728
      %v812 = vpop.f32.mrf.mxu0
      %v813 = vadd.f32 %v670, %v812
      %v814 = vpop.f32.mrf.mxu0
      %v815 = vadd.f32 %v672, %v814
      %816 = vmatmul.bf16.gmra.mxu0 %v731
      %v817 = vpop.f32.mrf.mxu0
      %v818 = vadd.f32 %v675, %v817
      %v819 = vpop.f32.mrf.mxu0
      %v820 = vadd.f32 %v677, %v819
      %821 = vdwg.mxu0
      %vm822 = vcmask 1045504
      %v823 = vrot.slane %v283, 2
      %v824 = vrot.slane %v284, 2
      %v825 = vsel %vm822, %v823, %v824
      %v826 = vrot.slane %v285, 2
      %v827 = vsel %vm822, %v824, %v826
      %v828 = vrot.slane %v286, 2
      %v829 = vrot.slane %v287, 2
      %v830 = vsel %vm822, %v828, %v829
      %v831 = vrot.slane %v288, 2
      %v832 = vsel %vm822, %v829, %v831
      %v833 = vrot.slane %v289, 2
      %v834 = vrot.slane %v290, 2
      %v835 = vsel %vm822, %v833, %v834
      %v836 = vrot.slane %v291, 2
      %v837 = vsel %vm822, %v834, %v836
      %v838 = vrot.slane %v292, 2
      %v839 = vrot.slane %v293, 2
      %v840 = vsel %vm822, %v838, %v839
      %v841 = vrot.slane %v294, 2
      %v842 = vsel %vm822, %v839, %v841
      %v843 = vrot.slane %v295, 2
      %v844 = vrot.slane %v296, 2
      %v845 = vsel %vm822, %v843, %v844
      %v846 = vrot.slane %v297, 2
      %v847 = vsel %vm822, %v844, %v846
      %v848 = vrot.slane %v298, 2
      %v849 = vrot.slane %v299, 2
      %v850 = vsel %vm822, %v848, %v849
      %v851 = vrot.slane %v300, 2
      %v852 = vsel %vm822, %v849, %v851
      %v853 = vrot.slane %v301, 2
      %v854 = vrot.slane %v302, 2
      %v855 = vsel %vm822, %v853, %v854
      %v856 = vrot.slane %v303, 2
      %v857 = vsel %vm822, %v854, %v856
      %v858 = vrot.slane %v304, 2
      %v859 = vrot.slane %v305, 2
      %v860 = vsel %vm822, %v858, %v859
      %v861 = vrot.slane %v306, 2
      %v862 = vsel %vm822, %v859, %v861
      %v863 = vrot.slane %v307, 2
      %v864 = vrot.slane %v308, 2
      %v865 = vsel %vm822, %v863, %v864
      %v866 = vrot.slane %v309, 2
      %v867 = vsel %vm822, %v864, %v866
      %v868 = vrot.slane %v310, 2
      %v869 = vrot.slane %v311, 2
      %v870 = vsel %vm822, %v868, %v869
      %v871 = vrot.slane %v312, 2
      %v872 = vsel %vm822, %v869, %v871
      %v873 = vrot.slane %v313, 2
      %v874 = vrot.slane %v314, 2
      %v875 = vsel %vm822, %v873, %v874
      %v876 = vrot.slane %v315, 2
      %v877 = vsel %vm822, %v874, %v876
      %v878 = vrot.slane %v316, 2
      %v879 = vrot.slane %v317, 2
      %v880 = vsel %vm822, %v878, %v879
      %v881 = vrot.slane %v318, 2
      %v882 = vsel %vm822, %v879, %v881
      %v883 = vrot.slane %v319, 2
      %v884 = vrot.slane %v320, 2
      %v885 = vsel %vm822, %v883, %v884
      %v886 = vrot.slane %v321, 2
      %v887 = vsel %vm822, %v884, %v886
      %v888 = vrot.slane %v322, 2
      %v889 = vrot.slane %v323, 2
      %v890 = vsel %vm822, %v888, %v889
      %v891 = vrot.slane %v324, 2
      %v892 = vsel %vm822, %v889, %v891
      %v893 = vrot.slane %v325, 2
      %v894 = vrot.slane %v326, 2
      %v895 = vsel %vm822, %v893, %v894
      %v896 = vrot.slane %v327, 2
      %v897 = vsel %vm822, %v894, %v896
      %v898 = vrot.slane %v328, 2
      %v899 = vrot.slane %v329, 2
      %v900 = vsel %vm822, %v898, %v899
      %v901 = vrot.slane %v330, 2
      %v902 = vsel %vm822, %v899, %v901
      %v935 = vpack.c.bf16 %v827, %v825
      %v936 = vpack.c.bf16 %v832, %v830
      %v937 = vpack.c.bf16 %v837, %v835
      %v938 = vpack.c.bf16 %v842, %v840
      %v939 = vpack.c.bf16 %v847, %v845
      %v940 = vpack.c.bf16 %v852, %v850
      %v941 = vpack.c.bf16 %v857, %v855
      %v942 = vpack.c.bf16 %v862, %v860
      %v943 = vpack.c.bf16 %v867, %v865
      %v944 = vpack.c.bf16 %v872, %v870
      %v945 = vpack.c.bf16 %v877, %v875
      %v946 = vpack.c.bf16 %v882, %v880
      %v947 = vpack.c.bf16 %v887, %v885
      %v948 = vpack.c.bf16 %v892, %v890
      %v949 = vpack.c.bf16 %v897, %v895
      %v950 = vpack.c.bf16 %v902, %v900
      %s951 = scalar_lea.vmem %s1, 16
      %v952 = vld [vmem:[%s951] sm:$0xf]
      %v953 = vld [vmem:[%s951 + $0x4] sm:$0xf]
      %v956 = vunpack.c.l.b16 %v952
      %v957 = vunpack.c.l.b16 %v953
      %v958 = vpack.c.b16 %v957, %v956
      %v961 = vsel %vm541, %v935, 0
      %v964 = vsel %vm541, %v936, 0
      %v967 = vsel %vm541, %v937, 0
      %v970 = vsel %vm541, %v938, 0
      %v973 = vsel %vm541, %v939, 0
      %v976 = vsel %vm541, %v940, 0
      %v979 = vsel %vm541, %v941, 0
      %v982 = vsel %vm541, %v942, 0
      %v985 = vsel %vm541, %v943, 0
      %v988 = vsel %vm541, %v944, 0
      %v991 = vsel %vm541, %v945, 0
      %v994 = vsel %vm541, %v946, 0
      %v997 = vsel %vm541, %v947, 0
      %v1000 = vsel %vm541, %v948, 0
      %v1003 = vsel %vm541, %v949, 0
      %v1006 = vsel %vm541, %v950, 0
      %1008 = vmatpush.bf16.msra.mxu0 0
      %1009 = vmatpush.bf16.msra.mxu0 0
      %1010 = vmatpush.bf16.msra.mxu0 0
      %1011 = vmatpush.bf16.msra.mxu0 0
      %1012 = vmatpush.bf16.msra.mxu0 0
      %1013 = vmatpush.bf16.msra.mxu0 0
      %1014 = vmatpush.bf16.msra.mxu0 0
      %1015 = vmatpush.bf16.msra.mxu0 %v958
      %1016 = vmatmul.bf16.gmra.mxu0 %v961
      %v1017 = vpop.f32.mrf.mxu0
      %v1018 = vadd.f32 0.0, %v1017
      %v1019 = vpop.f32.mrf.mxu0
      %v1020 = vadd.f32 0.0, %v1019
      %1021 = vmatmul.bf16.gmra.mxu0 %v964
      %v1022 = vpop.f32.mrf.mxu0
      %v1023 = vadd.f32 0.0, %v1022
      %v1024 = vpop.f32.mrf.mxu0
      %v1025 = vadd.f32 0.0, %v1024
      %1026 = vmatmul.bf16.gmra.mxu0 %v967
      %v1027 = vpop.f32.mrf.mxu0
      %v1028 = vadd.f32 0.0, %v1027
      %v1029 = vpop.f32.mrf.mxu0
      %v1030 = vadd.f32 0.0, %v1029
      %1031 = vmatmul.bf16.gmra.mxu0 %v970
      %v1032 = vpop.f32.mrf.mxu0
      %v1033 = vadd.f32 0.0, %v1032
      %v1034 = vpop.f32.mrf.mxu0
      %v1035 = vadd.f32 0.0, %v1034
      %1036 = vmatmul.bf16.gmra.mxu0 %v973
      %v1037 = vpop.f32.mrf.mxu0
      %v1038 = vadd.f32 0.0, %v1037
      %v1039 = vpop.f32.mrf.mxu0
      %v1040 = vadd.f32 0.0, %v1039
      %1041 = vmatmul.bf16.gmra.mxu0 %v976
      %v1042 = vpop.f32.mrf.mxu0
      %v1043 = vadd.f32 0.0, %v1042
      %v1044 = vpop.f32.mrf.mxu0
      %v1045 = vadd.f32 0.0, %v1044
      %1046 = vmatmul.bf16.gmra.mxu0 %v979
      %v1047 = vpop.f32.mrf.mxu0
      %v1048 = vadd.f32 0.0, %v1047
      %v1049 = vpop.f32.mrf.mxu0
      %v1050 = vadd.f32 0.0, %v1049
      %1051 = vmatmul.bf16.gmra.mxu0 %v982
      %v1052 = vpop.f32.mrf.mxu0
      %v1053 = vadd.f32 0.0, %v1052
      %v1054 = vpop.f32.mrf.mxu0
      %v1055 = vadd.f32 0.0, %v1054
      %1056 = vmatmul.bf16.gmra.mxu0 %v985
      %v1057 = vpop.f32.mrf.mxu0
      %v1058 = vadd.f32 0.0, %v1057
      %v1059 = vpop.f32.mrf.mxu0
      %v1060 = vadd.f32 0.0, %v1059
      %1061 = vmatmul.bf16.gmra.mxu0 %v988
      %v1062 = vpop.f32.mrf.mxu0
      %v1063 = vadd.f32 0.0, %v1062
      %v1064 = vpop.f32.mrf.mxu0
      %v1065 = vadd.f32 0.0, %v1064
      %1066 = vmatmul.bf16.gmra.mxu0 %v991
      %v1067 = vpop.f32.mrf.mxu0
      %v1068 = vadd.f32 0.0, %v1067
      %v1069 = vpop.f32.mrf.mxu0
      %v1070 = vadd.f32 0.0, %v1069
      %1071 = vmatmul.bf16.gmra.mxu0 %v994
      %v1072 = vpop.f32.mrf.mxu0
      %v1073 = vadd.f32 0.0, %v1072
      %v1074 = vpop.f32.mrf.mxu0
      %v1075 = vadd.f32 0.0, %v1074
      %1076 = vmatmul.bf16.gmra.mxu0 %v997
      %v1077 = vpop.f32.mrf.mxu0
      %v1078 = vadd.f32 0.0, %v1077
      %v1079 = vpop.f32.mrf.mxu0
      %v1080 = vadd.f32 0.0, %v1079
      %1081 = vmatmul.bf16.gmra.mxu0 %v1000
      %v1082 = vpop.f32.mrf.mxu0
      %v1083 = vadd.f32 0.0, %v1082
      %v1084 = vpop.f32.mrf.mxu0
      %v1085 = vadd.f32 0.0, %v1084
      %1086 = vmatmul.bf16.gmra.mxu0 %v1003
      %v1087 = vpop.f32.mrf.mxu0
      %v1088 = vadd.f32 0.0, %v1087
      %v1089 = vpop.f32.mrf.mxu0
      %v1090 = vadd.f32 0.0, %v1089
      %1091 = vmatmul.bf16.gmra.mxu0 %v1006
      %v1092 = vpop.f32.mrf.mxu0
      %v1093 = vadd.f32 0.0, %v1092
      %v1094 = vpop.f32.mrf.mxu0
      %v1095 = vadd.f32 0.0, %v1094
      %1096 = vdwg.mxu0
      %v1097 = vadd.f32 %v743, %v1018
      %v1098 = vadd.f32 %v745, %v1020
      %v1099 = vadd.f32 %v748, %v1023
      %v1100 = vadd.f32 %v750, %v1025
      %v1101 = vadd.f32 %v753, %v1028
      %v1102 = vadd.f32 %v755, %v1030
      %v1103 = vadd.f32 %v758, %v1033
      %v1104 = vadd.f32 %v760, %v1035
      %v1105 = vadd.f32 %v763, %v1038
      %v1106 = vadd.f32 %v765, %v1040
      %v1107 = vadd.f32 %v768, %v1043
      %v1108 = vadd.f32 %v770, %v1045
      %v1109 = vadd.f32 %v773, %v1048
      %v1110 = vadd.f32 %v775, %v1050
      %v1111 = vadd.f32 %v778, %v1053
      %v1112 = vadd.f32 %v780, %v1055
      %v1113 = vadd.f32 %v783, %v1058
      %v1114 = vadd.f32 %v785, %v1060
      %v1115 = vadd.f32 %v788, %v1063
      %v1116 = vadd.f32 %v790, %v1065
      %v1117 = vadd.f32 %v793, %v1068
      %v1118 = vadd.f32 %v795, %v1070
      %v1119 = vadd.f32 %v798, %v1073
      %v1120 = vadd.f32 %v800, %v1075
      %v1121 = vadd.f32 %v803, %v1078
      %v1122 = vadd.f32 %v805, %v1080
      %v1123 = vadd.f32 %v808, %v1083
      %v1124 = vadd.f32 %v810, %v1085
      %v1125 = vadd.f32 %v813, %v1088
      %v1126 = vadd.f32 %v815, %v1090
      %v1127 = vadd.f32 %v818, %v1093
      %v1128 = vadd.f32 %v820, %v1095
      %v1129 = vpack.c.bf16 %v332, %v331
      %s1130 = scalar_lea.vmem %s1, 24
      %v1131 = vld [vmem:[%s1130] sm:$0xf]
      %v1132 = vld [vmem:[%s1130 + $0x4] sm:$0xf]
      %v1135 = vunpack.c.l.b16 %v1131
      %v1136 = vunpack.c.l.b16 %v1132
      %v1137 = vpack.c.b16 %v1136, %v1135
      %v1140 = vsel %vm541, %v1129, 0
      %1142 = vmatpush.bf16.msra.mxu0 0
      %1143 = vmatpush.bf16.msra.mxu0 0
      %1144 = vmatpush.bf16.msra.mxu0 0
      %1145 = vmatpush.bf16.msra.mxu0 0
      %1146 = vmatpush.bf16.msra.mxu0 0
      %1147 = vmatpush.bf16.msra.mxu0 0
      %1148 = vmatpush.bf16.msra.mxu0 0
      %1149 = vmatpush.bf16.msra.mxu0 %v1137
      %1150 = vmatmul.bf16.gmra.mxu0 %v689
      %v1151 = vpop.f32.mrf.mxu0
      %v1152 = vadd.f32 0.0, %v1151
      %v1153 = vpop.f32.mrf.mxu0
      %v1154 = vadd.f32 0.0, %v1153
      %1155 = vmatmul.bf16.gmra.mxu0 %v692
      %v1156 = vpop.f32.mrf.mxu0
      %v1157 = vadd.f32 0.0, %v1156
      %v1158 = vpop.f32.mrf.mxu0
      %v1159 = vadd.f32 0.0, %v1158
      %1160 = vmatmul.bf16.gmra.mxu0 %v695
      %v1161 = vpop.f32.mrf.mxu0
      %v1162 = vadd.f32 0.0, %v1161
      %v1163 = vpop.f32.mrf.mxu0
      %v1164 = vadd.f32 0.0, %v1163
      %1165 = vmatmul.bf16.gmra.mxu0 %v698
      %v1166 = vpop.f32.mrf.mxu0
      %v1167 = vadd.f32 0.0, %v1166
      %v1168 = vpop.f32.mrf.mxu0
      %v1169 = vadd.f32 0.0, %v1168
      %1170 = vmatmul.bf16.gmra.mxu0 %v701
      %v1171 = vpop.f32.mrf.mxu0
      %v1172 = vadd.f32 0.0, %v1171
      %v1173 = vpop.f32.mrf.mxu0
      %v1174 = vadd.f32 0.0, %v1173
      %1175 = vmatmul.bf16.gmra.mxu0 %v704
      %v1176 = vpop.f32.mrf.mxu0
      %v1177 = vadd.f32 0.0, %v1176
      %v1178 = vpop.f32.mrf.mxu0
      %v1179 = vadd.f32 0.0, %v1178
      %1180 = vmatmul.bf16.gmra.mxu0 %v707
      %v1181 = vpop.f32.mrf.mxu0
      %v1182 = vadd.f32 0.0, %v1181
      %v1183 = vpop.f32.mrf.mxu0
      %v1184 = vadd.f32 0.0, %v1183
      %1185 = vmatmul.bf16.gmra.mxu0 %v710
      %v1186 = vpop.f32.mrf.mxu0
      %v1187 = vadd.f32 0.0, %v1186
      %v1188 = vpop.f32.mrf.mxu0
      %v1189 = vadd.f32 0.0, %v1188
      %1190 = vmatmul.bf16.gmra.mxu0 %v713
      %v1191 = vpop.f32.mrf.mxu0
      %v1192 = vadd.f32 0.0, %v1191
      %v1193 = vpop.f32.mrf.mxu0
      %v1194 = vadd.f32 0.0, %v1193
      %1195 = vmatmul.bf16.gmra.mxu0 %v716
      %v1196 = vpop.f32.mrf.mxu0
      %v1197 = vadd.f32 0.0, %v1196
      %v1198 = vpop.f32.mrf.mxu0
      %v1199 = vadd.f32 0.0, %v1198
      %1200 = vmatmul.bf16.gmra.mxu0 %v719
      %v1201 = vpop.f32.mrf.mxu0
      %v1202 = vadd.f32 0.0, %v1201
      %v1203 = vpop.f32.mrf.mxu0
      %v1204 = vadd.f32 0.0, %v1203
      %1205 = vmatmul.bf16.gmra.mxu0 %v722
      %v1206 = vpop.f32.mrf.mxu0
      %v1207 = vadd.f32 0.0, %v1206
      %v1208 = vpop.f32.mrf.mxu0
      %v1209 = vadd.f32 0.0, %v1208
      %1210 = vmatmul.bf16.gmra.mxu0 %v725
      %v1211 = vpop.f32.mrf.mxu0
      %v1212 = vadd.f32 0.0, %v1211
      %v1213 = vpop.f32.mrf.mxu0
      %v1214 = vadd.f32 0.0, %v1213
      %1215 = vmatmul.bf16.gmra.mxu0 %v728
      %v1216 = vpop.f32.mrf.mxu0
      %v1217 = vadd.f32 0.0, %v1216
      %v1218 = vpop.f32.mrf.mxu0
      %v1219 = vadd.f32 0.0, %v1218
      %1220 = vmatmul.bf16.gmra.mxu0 %v731
      %v1221 = vpop.f32.mrf.mxu0
      %v1222 = vadd.f32 0.0, %v1221
      %v1223 = vpop.f32.mrf.mxu0
      %v1224 = vadd.f32 0.0, %v1223
      %1225 = vmatmul.bf16.gmra.mxu0 %v1140
      %v1226 = vpop.f32.mrf.mxu0
      %v1227 = vadd.f32 0.0, %v1226
      %v1228 = vpop.f32.mrf.mxu0
      %v1229 = vadd.f32 0.0, %v1228
      %1230 = vdwg.mxu0
      %v1231 = vadd.f32 %v1097, %v1152
      %v1232 = vadd.f32 %v1098, %v1154
      %v1233 = vadd.f32 %v1099, %v1157
      %v1234 = vadd.f32 %v1100, %v1159
      %v1235 = vadd.f32 %v1101, %v1162
      %v1236 = vadd.f32 %v1102, %v1164
      %v1237 = vadd.f32 %v1103, %v1167
      %v1238 = vadd.f32 %v1104, %v1169
      %v1239 = vadd.f32 %v1105, %v1172
      %v1240 = vadd.f32 %v1106, %v1174
      %v1241 = vadd.f32 %v1107, %v1177
      %v1242 = vadd.f32 %v1108, %v1179
      %v1243 = vadd.f32 %v1109, %v1182
      %v1244 = vadd.f32 %v1110, %v1184
      %v1245 = vadd.f32 %v1111, %v1187
      %v1246 = vadd.f32 %v1112, %v1189
      %v1247 = vadd.f32 %v1113, %v1192
      %v1248 = vadd.f32 %v1114, %v1194
      %v1249 = vadd.f32 %v1115, %v1197
      %v1250 = vadd.f32 %v1116, %v1199
      %v1251 = vadd.f32 %v1117, %v1202
      %v1252 = vadd.f32 %v1118, %v1204
      %v1253 = vadd.f32 %v1119, %v1207
      %v1254 = vadd.f32 %v1120, %v1209
      %v1255 = vadd.f32 %v1121, %v1212
      %v1256 = vadd.f32 %v1122, %v1214
      %v1257 = vadd.f32 %v1123, %v1217
      %v1258 = vadd.f32 %v1124, %v1219
      %v1259 = vadd.f32 %v1125, %v1222
      %v1260 = vadd.f32 %v1126, %v1224
      %v1261 = vadd.f32 %v1127, %v1227
      %v1262 = vadd.f32 %v1128, %v1229
      %v1266 = vrot.slane %v331, 1
      %v1267 = vrot.slane %v332, 1
      %v1268 = vsel %vm403, %v1266, %v1267
      %v1269 = vrot.slane %v333, 1
      %v1270 = vsel %vm403, %v1267, %v1269
      %v1273 = vpack.c.bf16 %v1270, %v1268
      %s1274 = scalar_lea.vmem %s1, 32
      %v1275 = vld [vmem:[%s1274] sm:$0xf]
      %v1276 = vld [vmem:[%s1274 + $0x4] sm:$0xf]
      %v1279 = vunpack.c.l.b16 %v1275
      %v1280 = vunpack.c.l.b16 %v1276
      %v1281 = vpack.c.b16 %v1280, %v1279
      %v1284 = vsel %vm541, %v1273, 0
      %1286 = vmatpush.bf16.msra.mxu0 0
      %1287 = vmatpush.bf16.msra.mxu0 0
      %1288 = vmatpush.bf16.msra.mxu0 0
      %1289 = vmatpush.bf16.msra.mxu0 0
      %1290 = vmatpush.bf16.msra.mxu0 0
      %1291 = vmatpush.bf16.msra.mxu0 0
      %1292 = vmatpush.bf16.msra.mxu0 0
      %1293 = vmatpush.bf16.msra.mxu0 %v1281
      %1294 = vmatmul.bf16.gmra.mxu0 %v546
      %v1295 = vpop.f32.mrf.mxu0
      %v1296 = vadd.f32 0.0, %v1295
      %v1297 = vpop.f32.mrf.mxu0
      %v1298 = vadd.f32 0.0, %v1297
      %1299 = vmatmul.bf16.gmra.mxu0 %v549
      %v1300 = vpop.f32.mrf.mxu0
      %v1301 = vadd.f32 0.0, %v1300
      %v1302 = vpop.f32.mrf.mxu0
      %v1303 = vadd.f32 0.0, %v1302
      %1304 = vmatmul.bf16.gmra.mxu0 %v552
      %v1305 = vpop.f32.mrf.mxu0
      %v1306 = vadd.f32 0.0, %v1305
      %v1307 = vpop.f32.mrf.mxu0
      %v1308 = vadd.f32 0.0, %v1307
      %1309 = vmatmul.bf16.gmra.mxu0 %v555
      %v1310 = vpop.f32.mrf.mxu0
      %v1311 = vadd.f32 0.0, %v1310
      %v1312 = vpop.f32.mrf.mxu0
      %v1313 = vadd.f32 0.0, %v1312
      %1314 = vmatmul.bf16.gmra.mxu0 %v558
      %v1315 = vpop.f32.mrf.mxu0
      %v1316 = vadd.f32 0.0, %v1315
      %v1317 = vpop.f32.mrf.mxu0
      %v1318 = vadd.f32 0.0, %v1317
      %1319 = vmatmul.bf16.gmra.mxu0 %v561
      %v1320 = vpop.f32.mrf.mxu0
      %v1321 = vadd.f32 0.0, %v1320
      %v1322 = vpop.f32.mrf.mxu0
      %v1323 = vadd.f32 0.0, %v1322
      %1324 = vmatmul.bf16.gmra.mxu0 %v564
      %v1325 = vpop.f32.mrf.mxu0
      %v1326 = vadd.f32 0.0, %v1325
      %v1327 = vpop.f32.mrf.mxu0
      %v1328 = vadd.f32 0.0, %v1327
      %1329 = vmatmul.bf16.gmra.mxu0 %v567
      %v1330 = vpop.f32.mrf.mxu0
      %v1331 = vadd.f32 0.0, %v1330
      %v1332 = vpop.f32.mrf.mxu0
      %v1333 = vadd.f32 0.0, %v1332
      %1334 = vmatmul.bf16.gmra.mxu0 %v570
      %v1335 = vpop.f32.mrf.mxu0
      %v1336 = vadd.f32 0.0, %v1335
      %v1337 = vpop.f32.mrf.mxu0
      %v1338 = vadd.f32 0.0, %v1337
      %1339 = vmatmul.bf16.gmra.mxu0 %v573
      %v1340 = vpop.f32.mrf.mxu0
      %v1341 = vadd.f32 0.0, %v1340
      %v1342 = vpop.f32.mrf.mxu0
      %v1343 = vadd.f32 0.0, %v1342
      %1344 = vmatmul.bf16.gmra.mxu0 %v576
      %v1345 = vpop.f32.mrf.mxu0
      %v1346 = vadd.f32 0.0, %v1345
      %v1347 = vpop.f32.mrf.mxu0
      %v1348 = vadd.f32 0.0, %v1347
      %1349 = vmatmul.bf16.gmra.mxu0 %v579
      %v1350 = vpop.f32.mrf.mxu0
      %v1351 = vadd.f32 0.0, %v1350
      %v1352 = vpop.f32.mrf.mxu0
      %v1353 = vadd.f32 0.0, %v1352
      %1354 = vmatmul.bf16.gmra.mxu0 %v582
      %v1355 = vpop.f32.mrf.mxu0
      %v1356 = vadd.f32 0.0, %v1355
      %v1357 = vpop.f32.mrf.mxu0
      %v1358 = vadd.f32 0.0, %v1357
      %1359 = vmatmul.bf16.gmra.mxu0 %v585
      %v1360 = vpop.f32.mrf.mxu0
      %v1361 = vadd.f32 0.0, %v1360
      %v1362 = vpop.f32.mrf.mxu0
      %v1363 = vadd.f32 0.0, %v1362
      %1364 = vmatmul.bf16.gmra.mxu0 %v588
      %v1365 = vpop.f32.mrf.mxu0
      %v1366 = vadd.f32 0.0, %v1365
      %v1367 = vpop.f32.mrf.mxu0
      %v1368 = vadd.f32 0.0, %v1367
      %1369 = vmatmul.bf16.gmra.mxu0 %v1284
      %v1370 = vpop.f32.mrf.mxu0
      %v1371 = vadd.f32 0.0, %v1370
      %v1372 = vpop.f32.mrf.mxu0
      %v1373 = vadd.f32 0.0, %v1372
      %1374 = vdwg.mxu0
      %v1375 = vadd.f32 %v1231, %v1296
      %v1376 = vadd.f32 %v1232, %v1298
      %v1377 = vadd.f32 %v1233, %v1301
      %v1378 = vadd.f32 %v1234, %v1303
      %v1379 = vadd.f32 %v1235, %v1306
      %v1380 = vadd.f32 %v1236, %v1308
      %v1381 = vadd.f32 %v1237, %v1311
      %v1382 = vadd.f32 %v1238, %v1313
      %v1383 = vadd.f32 %v1239, %v1316
      %v1384 = vadd.f32 %v1240, %v1318
      %v1385 = vadd.f32 %v1241, %v1321
      %v1386 = vadd.f32 %v1242, %v1323
      %v1387 = vadd.f32 %v1243, %v1326
      %v1388 = vadd.f32 %v1244, %v1328
      %v1389 = vadd.f32 %v1245, %v1331
      %v1390 = vadd.f32 %v1246, %v1333
      %v1391 = vadd.f32 %v1247, %v1336
      %v1392 = vadd.f32 %v1248, %v1338
      %v1393 = vadd.f32 %v1249, %v1341
      %v1394 = vadd.f32 %v1250, %v1343
      %v1395 = vadd.f32 %v1251, %v1346
      %v1396 = vadd.f32 %v1252, %v1348
      %v1397 = vadd.f32 %v1253, %v1351
      %v1398 = vadd.f32 %v1254, %v1353
      %v1399 = vadd.f32 %v1255, %v1356
      %v1400 = vadd.f32 %v1256, %v1358
      %v1401 = vadd.f32 %v1257, %v1361
      %v1402 = vadd.f32 %v1258, %v1363
      %v1403 = vadd.f32 %v1259, %v1366
      %v1404 = vadd.f32 %v1260, %v1368
      %v1405 = vadd.f32 %v1261, %v1371
      %v1406 = vadd.f32 %v1262, %v1373
      %v1407 = vrot.slane %v331, 2
      %v1408 = vrot.slane %v332, 2
      %v1409 = vsel %vm822, %v1407, %v1408
      %v1410 = vrot.slane %v333, 2
      %v1411 = vsel %vm822, %v1408, %v1410
      %v1414 = vpack.c.bf16 %v1411, %v1409
      %s1415 = scalar_lea.vmem %s1, 40
      %v1416 = vld [vmem:[%s1415] sm:$0xf]
      %v1417 = vld [vmem:[%s1415 + $0x4] sm:$0xf]
      %v1420 = vunpack.c.l.b16 %v1416
      %v1421 = vunpack.c.l.b16 %v1417
      %v1422 = vpack.c.b16 %v1421, %v1420
      %v1425 = vsel %vm541, %v1414, 0
      %1427 = vmatpush.bf16.msra.mxu0 0
      %1428 = vmatpush.bf16.msra.mxu0 0
      %1429 = vmatpush.bf16.msra.mxu0 0
      %1430 = vmatpush.bf16.msra.mxu0 0
      %1431 = vmatpush.bf16.msra.mxu0 0
      %1432 = vmatpush.bf16.msra.mxu0 0
      %1433 = vmatpush.bf16.msra.mxu0 0
      %1434 = vmatpush.bf16.msra.mxu0 %v1422
      %1435 = vmatmul.bf16.gmra.mxu0 %v964
      %v1436 = vpop.f32.mrf.mxu0
      %v1437 = vadd.f32 0.0, %v1436
      %v1438 = vpop.f32.mrf.mxu0
      %v1439 = vadd.f32 0.0, %v1438
      %1440 = vmatmul.bf16.gmra.mxu0 %v967
      %v1441 = vpop.f32.mrf.mxu0
      %v1442 = vadd.f32 0.0, %v1441
      %v1443 = vpop.f32.mrf.mxu0
      %v1444 = vadd.f32 0.0, %v1443
      %1445 = vmatmul.bf16.gmra.mxu0 %v970
      %v1446 = vpop.f32.mrf.mxu0
      %v1447 = vadd.f32 0.0, %v1446
      %v1448 = vpop.f32.mrf.mxu0
      %v1449 = vadd.f32 0.0, %v1448
      %1450 = vmatmul.bf16.gmra.mxu0 %v973
      %v1451 = vpop.f32.mrf.mxu0
      %v1452 = vadd.f32 0.0, %v1451
      %v1453 = vpop.f32.mrf.mxu0
      %v1454 = vadd.f32 0.0, %v1453
      %1455 = vmatmul.bf16.gmra.mxu0 %v976
      %v1456 = vpop.f32.mrf.mxu0
      %v1457 = vadd.f32 0.0, %v1456
      %v1458 = vpop.f32.mrf.mxu0
      %v1459 = vadd.f32 0.0, %v1458
      %1460 = vmatmul.bf16.gmra.mxu0 %v979
      %v1461 = vpop.f32.mrf.mxu0
      %v1462 = vadd.f32 0.0, %v1461
      %v1463 = vpop.f32.mrf.mxu0
      %v1464 = vadd.f32 0.0, %v1463
      %1465 = vmatmul.bf16.gmra.mxu0 %v982
      %v1466 = vpop.f32.mrf.mxu0
      %v1467 = vadd.f32 0.0, %v1466
      %v1468 = vpop.f32.mrf.mxu0
      %v1469 = vadd.f32 0.0, %v1468
      %1470 = vmatmul.bf16.gmra.mxu0 %v985
      %v1471 = vpop.f32.mrf.mxu0
      %v1472 = vadd.f32 0.0, %v1471
      %v1473 = vpop.f32.mrf.mxu0
      %v1474 = vadd.f32 0.0, %v1473
      %1475 = vmatmul.bf16.gmra.mxu0 %v988
      %v1476 = vpop.f32.mrf.mxu0
      %v1477 = vadd.f32 0.0, %v1476
      %v1478 = vpop.f32.mrf.mxu0
      %v1479 = vadd.f32 0.0, %v1478
      %1480 = vmatmul.bf16.gmra.mxu0 %v991
      %v1481 = vpop.f32.mrf.mxu0
      %v1482 = vadd.f32 0.0, %v1481
      %v1483 = vpop.f32.mrf.mxu0
      %v1484 = vadd.f32 0.0, %v1483
      %1485 = vmatmul.bf16.gmra.mxu0 %v994
      %v1486 = vpop.f32.mrf.mxu0
      %v1487 = vadd.f32 0.0, %v1486
      %v1488 = vpop.f32.mrf.mxu0
      %v1489 = vadd.f32 0.0, %v1488
      %1490 = vmatmul.bf16.gmra.mxu0 %v997
      %v1491 = vpop.f32.mrf.mxu0
      %v1492 = vadd.f32 0.0, %v1491
      %v1493 = vpop.f32.mrf.mxu0
      %v1494 = vadd.f32 0.0, %v1493
      %1495 = vmatmul.bf16.gmra.mxu0 %v1000
      %v1496 = vpop.f32.mrf.mxu0
      %v1497 = vadd.f32 0.0, %v1496
      %v1498 = vpop.f32.mrf.mxu0
      %v1499 = vadd.f32 0.0, %v1498
      %1500 = vmatmul.bf16.gmra.mxu0 %v1003
      %v1501 = vpop.f32.mrf.mxu0
      %v1502 = vadd.f32 0.0, %v1501
      %v1503 = vpop.f32.mrf.mxu0
      %v1504 = vadd.f32 0.0, %v1503
      %1505 = vmatmul.bf16.gmra.mxu0 %v1006
      %v1506 = vpop.f32.mrf.mxu0
      %v1507 = vadd.f32 0.0, %v1506
      %v1508 = vpop.f32.mrf.mxu0
      %v1509 = vadd.f32 0.0, %v1508
      %1510 = vmatmul.bf16.gmra.mxu0 %v1425
      %v1511 = vpop.f32.mrf.mxu0
      %v1512 = vadd.f32 0.0, %v1511
      %v1513 = vpop.f32.mrf.mxu0
      %v1514 = vadd.f32 0.0, %v1513
      %1515 = vdwg.mxu0
      %v1516 = vadd.f32 %v1375, %v1437
      %v1517 = vadd.f32 %v1376, %v1439
      %v1518 = vadd.f32 %v1377, %v1442
      %v1519 = vadd.f32 %v1378, %v1444
      %v1520 = vadd.f32 %v1379, %v1447
      %v1521 = vadd.f32 %v1380, %v1449
      %v1522 = vadd.f32 %v1381, %v1452
      %v1523 = vadd.f32 %v1382, %v1454
      %v1524 = vadd.f32 %v1383, %v1457
      %v1525 = vadd.f32 %v1384, %v1459
      %v1526 = vadd.f32 %v1385, %v1462
      %v1527 = vadd.f32 %v1386, %v1464
      %v1528 = vadd.f32 %v1387, %v1467
      %v1529 = vadd.f32 %v1388, %v1469
      %v1530 = vadd.f32 %v1389, %v1472
      %v1531 = vadd.f32 %v1390, %v1474
      %v1532 = vadd.f32 %v1391, %v1477
      %v1533 = vadd.f32 %v1392, %v1479
      %v1534 = vadd.f32 %v1393, %v1482
      %v1535 = vadd.f32 %v1394, %v1484
      %v1536 = vadd.f32 %v1395, %v1487
      %v1537 = vadd.f32 %v1396, %v1489
      %v1538 = vadd.f32 %v1397, %v1492
      %v1539 = vadd.f32 %v1398, %v1494
      %v1540 = vadd.f32 %v1399, %v1497
      %v1541 = vadd.f32 %v1400, %v1499
      %v1542 = vadd.f32 %v1401, %v1502
      %v1543 = vadd.f32 %v1402, %v1504
      %v1544 = vadd.f32 %v1403, %v1507
      %v1545 = vadd.f32 %v1404, %v1509
      %v1546 = vadd.f32 %v1405, %v1512
      %v1547 = vadd.f32 %v1406, %v1514
      %v1548 = vpack.c.bf16 %v335, %v334
      %s1549 = scalar_lea.vmem %s1, 48
      %v1550 = vld [vmem:[%s1549] sm:$0xf]
      %v1551 = vld [vmem:[%s1549 + $0x4] sm:$0xf]
      %v1554 = vunpack.c.l.b16 %v1550
      %v1555 = vunpack.c.l.b16 %v1551
      %v1556 = vpack.c.b16 %v1555, %v1554
      %v1559 = vsel %vm541, %v1548, 0
      %1561 = vmatpush.bf16.msra.mxu0 0
      %1562 = vmatpush.bf16.msra.mxu0 0
      %1563 = vmatpush.bf16.msra.mxu0 0
      %1564 = vmatpush.bf16.msra.mxu0 0
      %1565 = vmatpush.bf16.msra.mxu0 0
      %1566 = vmatpush.bf16.msra.mxu0 0
      %1567 = vmatpush.bf16.msra.mxu0 0
      %1568 = vmatpush.bf16.msra.mxu0 %v1556
      %1569 = vmatmul.bf16.gmra.mxu0 %v692
      %v1570 = vpop.f32.mrf.mxu0
      %v1571 = vadd.f32 0.0, %v1570
      %v1572 = vpop.f32.mrf.mxu0
      %v1573 = vadd.f32 0.0, %v1572
      %1574 = vmatmul.bf16.gmra.mxu0 %v695
      %v1575 = vpop.f32.mrf.mxu0
      %v1576 = vadd.f32 0.0, %v1575
      %v1577 = vpop.f32.mrf.mxu0
      %v1578 = vadd.f32 0.0, %v1577
      %1579 = vmatmul.bf16.gmra.mxu0 %v698
      %v1580 = vpop.f32.mrf.mxu0
      %v1581 = vadd.f32 0.0, %v1580
      %v1582 = vpop.f32.mrf.mxu0
      %v1583 = vadd.f32 0.0, %v1582
      %1584 = vmatmul.bf16.gmra.mxu0 %v701
      %v1585 = vpop.f32.mrf.mxu0
      %v1586 = vadd.f32 0.0, %v1585
      %v1587 = vpop.f32.mrf.mxu0
      %v1588 = vadd.f32 0.0, %v1587
      %1589 = vmatmul.bf16.gmra.mxu0 %v704
      %v1590 = vpop.f32.mrf.mxu0
      %v1591 = vadd.f32 0.0, %v1590
      %v1592 = vpop.f32.mrf.mxu0
      %v1593 = vadd.f32 0.0, %v1592
      %1594 = vmatmul.bf16.gmra.mxu0 %v707
      %v1595 = vpop.f32.mrf.mxu0
      %v1596 = vadd.f32 0.0, %v1595
      %v1597 = vpop.f32.mrf.mxu0
      %v1598 = vadd.f32 0.0, %v1597
      %1599 = vmatmul.bf16.gmra.mxu0 %v710
      %v1600 = vpop.f32.mrf.mxu0
      %v1601 = vadd.f32 0.0, %v1600
      %v1602 = vpop.f32.mrf.mxu0
      %v1603 = vadd.f32 0.0, %v1602
      %1604 = vmatmul.bf16.gmra.mxu0 %v713
      %v1605 = vpop.f32.mrf.mxu0
      %v1606 = vadd.f32 0.0, %v1605
      %v1607 = vpop.f32.mrf.mxu0
      %v1608 = vadd.f32 0.0, %v1607
      %1609 = vmatmul.bf16.gmra.mxu0 %v716
      %v1610 = vpop.f32.mrf.mxu0
      %v1611 = vadd.f32 0.0, %v1610
      %v1612 = vpop.f32.mrf.mxu0
      %v1613 = vadd.f32 0.0, %v1612
      %1614 = vmatmul.bf16.gmra.mxu0 %v719
      %v1615 = vpop.f32.mrf.mxu0
      %v1616 = vadd.f32 0.0, %v1615
      %v1617 = vpop.f32.mrf.mxu0
      %v1618 = vadd.f32 0.0, %v1617
      %1619 = vmatmul.bf16.gmra.mxu0 %v722
      %v1620 = vpop.f32.mrf.mxu0
      %v1621 = vadd.f32 0.0, %v1620
      %v1622 = vpop.f32.mrf.mxu0
      %v1623 = vadd.f32 0.0, %v1622
      %1624 = vmatmul.bf16.gmra.mxu0 %v725
      %v1625 = vpop.f32.mrf.mxu0
      %v1626 = vadd.f32 0.0, %v1625
      %v1627 = vpop.f32.mrf.mxu0
      %v1628 = vadd.f32 0.0, %v1627
      %1629 = vmatmul.bf16.gmra.mxu0 %v728
      %v1630 = vpop.f32.mrf.mxu0
      %v1631 = vadd.f32 0.0, %v1630
      %v1632 = vpop.f32.mrf.mxu0
      %v1633 = vadd.f32 0.0, %v1632
      %1634 = vmatmul.bf16.gmra.mxu0 %v731
      %v1635 = vpop.f32.mrf.mxu0
      %v1636 = vadd.f32 0.0, %v1635
      %v1637 = vpop.f32.mrf.mxu0
      %v1638 = vadd.f32 0.0, %v1637
      %1639 = vmatmul.bf16.gmra.mxu0 %v1140
      %v1640 = vpop.f32.mrf.mxu0
      %v1641 = vadd.f32 0.0, %v1640
      %v1642 = vpop.f32.mrf.mxu0
      %v1643 = vadd.f32 0.0, %v1642
      %1644 = vmatmul.bf16.gmra.mxu0 %v1559
      %v1645 = vpop.f32.mrf.mxu0
      %v1646 = vadd.f32 0.0, %v1645
      %v1647 = vpop.f32.mrf.mxu0
      %v1648 = vadd.f32 0.0, %v1647
      %1649 = vdwg.mxu0
      %v1650 = vadd.f32 %v1516, %v1571
      %v1651 = vadd.f32 %v1517, %v1573
      %v1652 = vadd.f32 %v1518, %v1576
      %v1653 = vadd.f32 %v1519, %v1578
      %v1654 = vadd.f32 %v1520, %v1581
      %v1655 = vadd.f32 %v1521, %v1583
      %v1656 = vadd.f32 %v1522, %v1586
      %v1657 = vadd.f32 %v1523, %v1588
      %v1658 = vadd.f32 %v1524, %v1591
      %v1659 = vadd.f32 %v1525, %v1593
      %v1660 = vadd.f32 %v1526, %v1596
      %v1661 = vadd.f32 %v1527, %v1598
      %v1662 = vadd.f32 %v1528, %v1601
      %v1663 = vadd.f32 %v1529, %v1603
      %v1664 = vadd.f32 %v1530, %v1606
      %v1665 = vadd.f32 %v1531, %v1608
      %v1666 = vadd.f32 %v1532, %v1611
      %v1667 = vadd.f32 %v1533, %v1613
      %v1668 = vadd.f32 %v1534, %v1616
      %v1669 = vadd.f32 %v1535, %v1618
      %v1670 = vadd.f32 %v1536, %v1621
      %v1671 = vadd.f32 %v1537, %v1623
      %v1672 = vadd.f32 %v1538, %v1626
      %v1673 = vadd.f32 %v1539, %v1628
      %v1674 = vadd.f32 %v1540, %v1631
      %v1675 = vadd.f32 %v1541, %v1633
      %v1676 = vadd.f32 %v1542, %v1636
      %v1677 = vadd.f32 %v1543, %v1638
      %v1678 = vadd.f32 %v1544, %v1641
      %v1679 = vadd.f32 %v1545, %v1643
      %v1680 = vadd.f32 %v1546, %v1646
      %v1681 = vadd.f32 %v1547, %v1648
      %v1685 = vrot.slane %v334, 1
      %v1686 = vrot.slane %v335, 1
      %v1687 = vsel %vm403, %v1685, %v1686
      %v1688 = vrot.slane %v336, 1
      %v1689 = vsel %vm403, %v1686, %v1688
      %v1692 = vpack.c.bf16 %v1689, %v1687
      %s1693 = scalar_lea.vmem %s1, 56
      %v1694 = vld [vmem:[%s1693] sm:$0xf]
      %v1695 = vld [vmem:[%s1693 + $0x4] sm:$0xf]
      %v1698 = vunpack.c.l.b16 %v1694
      %v1699 = vunpack.c.l.b16 %v1695
      %v1700 = vpack.c.b16 %v1699, %v1698
      %v1703 = vsel %vm541, %v1692, 0
      %1705 = vmatpush.bf16.msra.mxu0 0
      %1706 = vmatpush.bf16.msra.mxu0 0
      %1707 = vmatpush.bf16.msra.mxu0 0
      %1708 = vmatpush.bf16.msra.mxu0 0
      %1709 = vmatpush.bf16.msra.mxu0 0
      %1710 = vmatpush.bf16.msra.mxu0 0
      %1711 = vmatpush.bf16.msra.mxu0 0
      %1712 = vmatpush.bf16.msra.mxu0 %v1700
      %1713 = vmatmul.bf16.gmra.mxu0 %v549
      %v1714 = vpop.f32.mrf.mxu0
      %v1715 = vadd.f32 0.0, %v1714
      %v1716 = vpop.f32.mrf.mxu0
      %v1717 = vadd.f32 0.0, %v1716
      %1718 = vmatmul.bf16.gmra.mxu0 %v552
      %v1719 = vpop.f32.mrf.mxu0
      %v1720 = vadd.f32 0.0, %v1719
      %v1721 = vpop.f32.mrf.mxu0
      %v1722 = vadd.f32 0.0, %v1721
      %1723 = vmatmul.bf16.gmra.mxu0 %v555
      %v1724 = vpop.f32.mrf.mxu0
      %v1725 = vadd.f32 0.0, %v1724
      %v1726 = vpop.f32.mrf.mxu0
      %v1727 = vadd.f32 0.0, %v1726
      %1728 = vmatmul.bf16.gmra.mxu0 %v558
      %v1729 = vpop.f32.mrf.mxu0
      %v1730 = vadd.f32 0.0, %v1729
      %v1731 = vpop.f32.mrf.mxu0
      %v1732 = vadd.f32 0.0, %v1731
      %1733 = vmatmul.bf16.gmra.mxu0 %v561
      %v1734 = vpop.f32.mrf.mxu0
      %v1735 = vadd.f32 0.0, %v1734
      %v1736 = vpop.f32.mrf.mxu0
      %v1737 = vadd.f32 0.0, %v1736
      %1738 = vmatmul.bf16.gmra.mxu0 %v564
      %v1739 = vpop.f32.mrf.mxu0
      %v1740 = vadd.f32 0.0, %v1739
      %v1741 = vpop.f32.mrf.mxu0
      %v1742 = vadd.f32 0.0, %v1741
      %1743 = vmatmul.bf16.gmra.mxu0 %v567
      %v1744 = vpop.f32.mrf.mxu0
      %v1745 = vadd.f32 0.0, %v1744
      %v1746 = vpop.f32.mrf.mxu0
      %v1747 = vadd.f32 0.0, %v1746
      %1748 = vmatmul.bf16.gmra.mxu0 %v570
      %v1749 = vpop.f32.mrf.mxu0
      %v1750 = vadd.f32 0.0, %v1749
      %v1751 = vpop.f32.mrf.mxu0
      %v1752 = vadd.f32 0.0, %v1751
      %1753 = vmatmul.bf16.gmra.mxu0 %v573
      %v1754 = vpop.f32.mrf.mxu0
      %v1755 = vadd.f32 0.0, %v1754
      %v1756 = vpop.f32.mrf.mxu0
      %v1757 = vadd.f32 0.0, %v1756
      %1758 = vmatmul.bf16.gmra.mxu0 %v576
      %v1759 = vpop.f32.mrf.mxu0
      %v1760 = vadd.f32 0.0, %v1759
      %v1761 = vpop.f32.mrf.mxu0
      %v1762 = vadd.f32 0.0, %v1761
      %1763 = vmatmul.bf16.gmra.mxu0 %v579
      %v1764 = vpop.f32.mrf.mxu0
      %v1765 = vadd.f32 0.0, %v1764
      %v1766 = vpop.f32.mrf.mxu0
      %v1767 = vadd.f32 0.0, %v1766
      %1768 = vmatmul.bf16.gmra.mxu0 %v582
      %v1769 = vpop.f32.mrf.mxu0
      %v1770 = vadd.f32 0.0, %v1769
      %v1771 = vpop.f32.mrf.mxu0
      %v1772 = vadd.f32 0.0, %v1771
      %1773 = vmatmul.bf16.gmra.mxu0 %v585
      %v1774 = vpop.f32.mrf.mxu0
      %v1775 = vadd.f32 0.0, %v1774
      %v1776 = vpop.f32.mrf.mxu0
      %v1777 = vadd.f32 0.0, %v1776
      %1778 = vmatmul.bf16.gmra.mxu0 %v588
      %v1779 = vpop.f32.mrf.mxu0
      %v1780 = vadd.f32 0.0, %v1779
      %v1781 = vpop.f32.mrf.mxu0
      %v1782 = vadd.f32 0.0, %v1781
      %1783 = vmatmul.bf16.gmra.mxu0 %v1284
      %v1784 = vpop.f32.mrf.mxu0
      %v1785 = vadd.f32 0.0, %v1784
      %v1786 = vpop.f32.mrf.mxu0
      %v1787 = vadd.f32 0.0, %v1786
      %1788 = vmatmul.bf16.gmra.mxu0 %v1703
      %v1789 = vpop.f32.mrf.mxu0
      %v1790 = vadd.f32 0.0, %v1789
      %v1791 = vpop.f32.mrf.mxu0
      %v1792 = vadd.f32 0.0, %v1791
      %1793 = vdwg.mxu0
      %v1794 = vadd.f32 %v1650, %v1715
      %v1795 = vadd.f32 %v1651, %v1717
      %v1796 = vadd.f32 %v1652, %v1720
      %v1797 = vadd.f32 %v1653, %v1722
      %v1798 = vadd.f32 %v1654, %v1725
      %v1799 = vadd.f32 %v1655, %v1727
      %v1800 = vadd.f32 %v1656, %v1730
      %v1801 = vadd.f32 %v1657, %v1732
      %v1802 = vadd.f32 %v1658, %v1735
      %v1803 = vadd.f32 %v1659, %v1737
      %v1804 = vadd.f32 %v1660, %v1740
      %v1805 = vadd.f32 %v1661, %v1742
      %v1806 = vadd.f32 %v1662, %v1745
      %v1807 = vadd.f32 %v1663, %v1747
      %v1808 = vadd.f32 %v1664, %v1750
      %v1809 = vadd.f32 %v1665, %v1752
      %v1810 = vadd.f32 %v1666, %v1755
      %v1811 = vadd.f32 %v1667, %v1757
      %v1812 = vadd.f32 %v1668, %v1760
      %v1813 = vadd.f32 %v1669, %v1762
      %v1814 = vadd.f32 %v1670, %v1765
      %v1815 = vadd.f32 %v1671, %v1767
      %v1816 = vadd.f32 %v1672, %v1770
      %v1817 = vadd.f32 %v1673, %v1772
      %v1818 = vadd.f32 %v1674, %v1775
      %v1819 = vadd.f32 %v1675, %v1777
      %v1820 = vadd.f32 %v1676, %v1780
      %v1821 = vadd.f32 %v1677, %v1782
      %v1822 = vadd.f32 %v1678, %v1785
      %v1823 = vadd.f32 %v1679, %v1787
      %v1824 = vadd.f32 %v1680, %v1790
      %v1825 = vadd.f32 %v1681, %v1792
      %v1826 = vrot.slane %v334, 2
      %v1827 = vrot.slane %v335, 2
      %v1828 = vsel %vm822, %v1826, %v1827
      %v1829 = vrot.slane %v336, 2
      %v1830 = vsel %vm822, %v1827, %v1829
      %v1833 = vpack.c.bf16 %v1830, %v1828
      %s1834 = scalar_lea.vmem %s1, 64
      %v1835 = vld [vmem:[%s1834] sm:$0xf]
      %v1836 = vld [vmem:[%s1834 + $0x4] sm:$0xf]
      %v1839 = vunpack.c.l.b16 %v1835
      %v1840 = vunpack.c.l.b16 %v1836
      %v1841 = vpack.c.b16 %v1840, %v1839
      %v1844 = vsel %vm541, %v1833, 0
      %1846 = vmatpush.bf16.msra.mxu0 0
      %1847 = vmatpush.bf16.msra.mxu0 0
      %1848 = vmatpush.bf16.msra.mxu0 0
      %1849 = vmatpush.bf16.msra.mxu0 0
      %1850 = vmatpush.bf16.msra.mxu0 0
      %1851 = vmatpush.bf16.msra.mxu0 0
      %1852 = vmatpush.bf16.msra.mxu0 0
      %1853 = vmatpush.bf16.msra.mxu0 %v1841
      %1854 = vmatmul.bf16.gmra.mxu0 %v967
      %v1855 = vpop.f32.mrf.mxu0
      %v1856 = vadd.f32 0.0, %v1855
      %v1857 = vpop.f32.mrf.mxu0
      %v1858 = vadd.f32 0.0, %v1857
      %1859 = vmatmul.bf16.gmra.mxu0 %v970
      %v1860 = vpop.f32.mrf.mxu0
      %v1861 = vadd.f32 0.0, %v1860
      %v1862 = vpop.f32.mrf.mxu0
      %v1863 = vadd.f32 0.0, %v1862
      %1864 = vmatmul.bf16.gmra.mxu0 %v973
      %v1865 = vpop.f32.mrf.mxu0
      %v1866 = vadd.f32 0.0, %v1865
      %v1867 = vpop.f32.mrf.mxu0
      %v1868 = vadd.f32 0.0, %v1867
      %1869 = vmatmul.bf16.gmra.mxu0 %v976
      %v1870 = vpop.f32.mrf.mxu0
      %v1871 = vadd.f32 0.0, %v1870
      %v1872 = vpop.f32.mrf.mxu0
      %v1873 = vadd.f32 0.0, %v1872
      %1874 = vmatmul.bf16.gmra.mxu0 %v979
      %v1875 = vpop.f32.mrf.mxu0
      %v1876 = vadd.f32 0.0, %v1875
      %v1877 = vpop.f32.mrf.mxu0
      %v1878 = vadd.f32 0.0, %v1877
      %1879 = vmatmul.bf16.gmra.mxu0 %v982
      %v1880 = vpop.f32.mrf.mxu0
      %v1881 = vadd.f32 0.0, %v1880
      %v1882 = vpop.f32.mrf.mxu0
      %v1883 = vadd.f32 0.0, %v1882
      %1884 = vmatmul.bf16.gmra.mxu0 %v985
      %v1885 = vpop.f32.mrf.mxu0
      %v1886 = vadd.f32 0.0, %v1885
      %v1887 = vpop.f32.mrf.mxu0
      %v1888 = vadd.f32 0.0, %v1887
      %1889 = vmatmul.bf16.gmra.mxu0 %v988
      %v1890 = vpop.f32.mrf.mxu0
      %v1891 = vadd.f32 0.0, %v1890
      %v1892 = vpop.f32.mrf.mxu0
      %v1893 = vadd.f32 0.0, %v1892
      %1894 = vmatmul.bf16.gmra.mxu0 %v991
      %v1895 = vpop.f32.mrf.mxu0
      %v1896 = vadd.f32 0.0, %v1895
      %v1897 = vpop.f32.mrf.mxu0
      %v1898 = vadd.f32 0.0, %v1897
      %1899 = vmatmul.bf16.gmra.mxu0 %v994
      %v1900 = vpop.f32.mrf.mxu0
      %v1901 = vadd.f32 0.0, %v1900
      %v1902 = vpop.f32.mrf.mxu0
      %v1903 = vadd.f32 0.0, %v1902
      %1904 = vmatmul.bf16.gmra.mxu0 %v997
      %v1905 = vpop.f32.mrf.mxu0
      %v1906 = vadd.f32 0.0, %v1905
      %v1907 = vpop.f32.mrf.mxu0
      %v1908 = vadd.f32 0.0, %v1907
      %1909 = vmatmul.bf16.gmra.mxu0 %v1000
      %v1910 = vpop.f32.mrf.mxu0
      %v1911 = vadd.f32 0.0, %v1910
      %v1912 = vpop.f32.mrf.mxu0
      %v1913 = vadd.f32 0.0, %v1912
      %1914 = vmatmul.bf16.gmra.mxu0 %v1003
      %v1915 = vpop.f32.mrf.mxu0
      %v1916 = vadd.f32 0.0, %v1915
      %v1917 = vpop.f32.mrf.mxu0
      %v1918 = vadd.f32 0.0, %v1917
      %1919 = vmatmul.bf16.gmra.mxu0 %v1006
      %v1920 = vpop.f32.mrf.mxu0
      %v1921 = vadd.f32 0.0, %v1920
      %v1922 = vpop.f32.mrf.mxu0
      %v1923 = vadd.f32 0.0, %v1922
      %1924 = vmatmul.bf16.gmra.mxu0 %v1425
      %v1925 = vpop.f32.mrf.mxu0
      %v1926 = vadd.f32 0.0, %v1925
      %v1927 = vpop.f32.mrf.mxu0
      %v1928 = vadd.f32 0.0, %v1927
      %1929 = vmatmul.bf16.gmra.mxu0 %v1844
      %v1930 = vpop.f32.mrf.mxu0
      %v1931 = vadd.f32 0.0, %v1930
      %v1932 = vpop.f32.mrf.mxu0
      %v1933 = vadd.f32 0.0, %v1932
      %1934 = vdwg.mxu0
      %v1935 = vadd.f32 %v1794, %v1856
      %v1936 = vadd.f32 %v1795, %v1858
      %v1937 = vadd.f32 %v1796, %v1861
      %v1938 = vadd.f32 %v1797, %v1863
      %v1939 = vadd.f32 %v1798, %v1866
      %v1940 = vadd.f32 %v1799, %v1868
      %v1941 = vadd.f32 %v1800, %v1871
      %v1942 = vadd.f32 %v1801, %v1873
      %v1943 = vadd.f32 %v1802, %v1876
      %v1944 = vadd.f32 %v1803, %v1878
      %v1945 = vadd.f32 %v1804, %v1881
      %v1946 = vadd.f32 %v1805, %v1883
      %v1947 = vadd.f32 %v1806, %v1886
      %v1948 = vadd.f32 %v1807, %v1888
      %v1949 = vadd.f32 %v1808, %v1891
      %v1950 = vadd.f32 %v1809, %v1893
      %v1951 = vadd.f32 %v1810, %v1896
      %v1952 = vadd.f32 %v1811, %v1898
      %v1953 = vadd.f32 %v1812, %v1901
      %v1954 = vadd.f32 %v1813, %v1903
      %v1955 = vadd.f32 %v1814, %v1906
      %v1956 = vadd.f32 %v1815, %v1908
      %v1957 = vadd.f32 %v1816, %v1911
      %v1958 = vadd.f32 %v1817, %v1913
      %v1959 = vadd.f32 %v1818, %v1916
      %v1960 = vadd.f32 %v1819, %v1918
      %v1961 = vadd.f32 %v1820, %v1921
      %v1962 = vadd.f32 %v1821, %v1923
      %v1963 = vadd.f32 %v1822, %v1926
      %v1964 = vadd.f32 %v1823, %v1928
      %v1965 = vadd.f32 %v1824, %v1931
      %v1966 = vadd.f32 %v1825, %v1933
      %1967 = vst [vmem:[%s168] sm:$0xff] %v1935
      %1968 = vst [vmem:[%s168 + $0x8] sm:$0xff] %v1936
      %1969 = vst [vmem:[%s168 + $0x10] sm:$0xff] %v1937
      %1970 = vst [vmem:[%s168 + $0x18] sm:$0xff] %v1938
      %1971 = vst [vmem:[%s168 + $0x20] sm:$0xff] %v1939
      %1972 = vst [vmem:[%s168 + $0x28] sm:$0xff] %v1940
      %1973 = vst [vmem:[%s168 + $0x30] sm:$0xff] %v1941
      %1974 = vst [vmem:[%s168 + $0x38] sm:$0xff] %v1942
      %1975 = vst [vmem:[%s168 + $0x40] sm:$0xff] %v1943
      %1976 = vst [vmem:[%s168 + $0x48] sm:$0xff] %v1944
      %1977 = vst [vmem:[%s168 + $0x50] sm:$0xff] %v1945
      %1978 = vst [vmem:[%s168 + $0x58] sm:$0xff] %v1946
      %1979 = vst [vmem:[%s168 + $0x60] sm:$0xff] %v1947
      %1980 = vst [vmem:[%s168 + $0x68] sm:$0xff] %v1948
      %1981 = vst [vmem:[%s168 + $0x70] sm:$0xff] %v1949
      %1982 = vst [vmem:[%s168 + $0x78] sm:$0xff] %v1950
      %1983 = vst [vmem:[%s168 + $0x80] sm:$0xff] %v1951
      %1984 = vst [vmem:[%s168 + $0x88] sm:$0xff] %v1952
      %1985 = vst [vmem:[%s168 + $0x90] sm:$0xff] %v1953
      %1986 = vst [vmem:[%s168 + $0x98] sm:$0xff] %v1954
      %1987 = vst [vmem:[%s168 + $0xa0] sm:$0xff] %v1955
      %1988 = vst [vmem:[%s168 + $0xa8] sm:$0xff] %v1956
      %1989 = vst [vmem:[%s168 + $0xb0] sm:$0xff] %v1957
      %1990 = vst [vmem:[%s168 + $0xb8] sm:$0xff] %v1958
      %1991 = vst [vmem:[%s168 + $0xc0] sm:$0xff] %v1959
      %1992 = vst [vmem:[%s168 + $0xc8] sm:$0xff] %v1960
      %1993 = vst [vmem:[%s168 + $0xd0] sm:$0xff] %v1961
      %1994 = vst [vmem:[%s168 + $0xd8] sm:$0xff] %v1962
      %1995 = vst [vmem:[%s168 + $0xe0] sm:$0xff] %v1963
      %1996 = vst [vmem:[%s168 + $0xe8] sm:$0xff] %v1964
      %1997 = vst [vmem:[%s168 + $0xf0] sm:$0xff] %v1965
      %1998 = vst [vmem:[%s168 + $0xf8] sm:$0xff] %v1966
      %v1999 = vld [vmem:[#allocation2] sm:$0x1]
      %v2000 = vadd.f32 %v1935, %v1936
      %v2001 = vadd.f32 %v2000, %v1937
      %v2002 = vadd.f32 %v2001, %v1938
      %v2003 = vadd.f32 %v2002, %v1939
      %v2004 = vadd.f32 %v2003, %v1940
      %v2005 = vadd.f32 %v2004, %v1941
      %v2006 = vadd.f32 %v2005, %v1942
      %v2007 = vadd.f32 %v2006, %v1943
      %v2008 = vadd.f32 %v2007, %v1944
      %v2009 = vadd.f32 %v2008, %v1945
      %v2010 = vadd.f32 %v2009, %v1946
      %v2011 = vadd.f32 %v2010, %v1947
      %v2012 = vadd.f32 %v2011, %v1948
      %v2013 = vadd.f32 %v2012, %v1949
      %v2014 = vadd.f32 %v2013, %v1950
      %v2015 = vadd.f32 %v2014, %v1951
      %v2016 = vadd.f32 %v2015, %v1952
      %v2017 = vadd.f32 %v2016, %v1953
      %v2018 = vadd.f32 %v2017, %v1954
      %v2019 = vadd.f32 %v2018, %v1955
      %v2020 = vadd.f32 %v2019, %v1956
      %v2021 = vadd.f32 %v2020, %v1957
      %v2022 = vadd.f32 %v2021, %v1958
      %v2023 = vadd.f32 %v2022, %v1959
      %v2024 = vadd.f32 %v2023, %v1960
      %v2025 = vadd.f32 %v2024, %v1961
      %v2026 = vadd.f32 %v2025, %v1962
      %v2027 = vadd.f32 %v2026, %v1963
      %v2028 = vadd.f32 %v2027, %v1964
      %v2029 = vadd.f32 %v2028, %v1965
      %v2030 = vadd.f32 %v2029, %v1966
      %v2031 = vrot.slane %v2030, 4
      %v2032 = vadd.f32 %v2030, %v2031
      %v2033 = vrot.slane %v2032, 2
      %v2034 = vadd.f32 %v2032, %v2033
      %v2035 = vrot.slane %v2034, 1
      %v2036 = vadd.f32 %v2034, %v2035
      %v2037 = vadd.f32 %v1999, %v2036
      %2038 = vst [vmem:[#allocation2] sm:$0x1] %v2037
      %v2039 = vld [vmem:[#allocation2 + $0x1] sm:$0x1]
      %v2040 = vmul.f32 %v1935, %v1935
      %v2041 = vmul.f32 %v1936, %v1936
      %v2042 = vmul.f32 %v1937, %v1937
      %v2043 = vmul.f32 %v1938, %v1938
      %v2044 = vmul.f32 %v1939, %v1939
      %v2045 = vmul.f32 %v1940, %v1940
      %v2046 = vmul.f32 %v1941, %v1941
      %v2047 = vmul.f32 %v1942, %v1942
      %v2048 = vmul.f32 %v1943, %v1943
      %v2049 = vmul.f32 %v1944, %v1944
      %v2050 = vmul.f32 %v1945, %v1945
      %v2051 = vmul.f32 %v1946, %v1946
      %v2052 = vmul.f32 %v1947, %v1947
      %v2053 = vmul.f32 %v1948, %v1948
      %v2054 = vmul.f32 %v1949, %v1949
      %v2055 = vmul.f32 %v1950, %v1950
      %v2056 = vmul.f32 %v1951, %v1951
      %v2057 = vmul.f32 %v1952, %v1952
      %v2058 = vmul.f32 %v1953, %v1953
      %v2059 = vmul.f32 %v1954, %v1954
      %v2060 = vmul.f32 %v1955, %v1955
      %v2061 = vmul.f32 %v1956, %v1956
      %v2062 = vmul.f32 %v1957, %v1957
      %v2063 = vmul.f32 %v1958, %v1958
      %v2064 = vmul.f32 %v1959, %v1959
      %v2065 = vmul.f32 %v1960, %v1960
      %v2066 = vmul.f32 %v1961, %v1961
      %v2067 = vmul.f32 %v1962, %v1962
      %v2068 = vmul.f32 %v1963, %v1963
      %v2069 = vmul.f32 %v1964, %v1964
      %v2070 = vmul.f32 %v1965, %v1965
      %v2071 = vmul.f32 %v1966, %v1966
      %v2072 = vadd.f32 %v2040, %v2041
      %v2073 = vadd.f32 %v2072, %v2042
      %v2074 = vadd.f32 %v2073, %v2043
      %v2075 = vadd.f32 %v2074, %v2044
      %v2076 = vadd.f32 %v2075, %v2045
      %v2077 = vadd.f32 %v2076, %v2046
      %v2078 = vadd.f32 %v2077, %v2047
      %v2079 = vadd.f32 %v2078, %v2048
      %v2080 = vadd.f32 %v2079, %v2049
      %v2081 = vadd.f32 %v2080, %v2050
      %v2082 = vadd.f32 %v2081, %v2051
      %v2083 = vadd.f32 %v2082, %v2052
      %v2084 = vadd.f32 %v2083, %v2053
      %v2085 = vadd.f32 %v2084, %v2054
      %v2086 = vadd.f32 %v2085, %v2055
      %v2087 = vadd.f32 %v2086, %v2056
      %v2088 = vadd.f32 %v2087, %v2057
      %v2089 = vadd.f32 %v2088, %v2058
      %v2090 = vadd.f32 %v2089, %v2059
      %v2091 = vadd.f32 %v2090, %v2060
      %v2092 = vadd.f32 %v2091, %v2061
      %v2093 = vadd.f32 %v2092, %v2062
      %v2094 = vadd.f32 %v2093, %v2063
      %v2095 = vadd.f32 %v2094, %v2064
      %v2096 = vadd.f32 %v2095, %v2065
      %v2097 = vadd.f32 %v2096, %v2066
      %v2098 = vadd.f32 %v2097, %v2067
      %v2099 = vadd.f32 %v2098, %v2068
      %v2100 = vadd.f32 %v2099, %v2069
      %v2101 = vadd.f32 %v2100, %v2070
      %v2102 = vadd.f32 %v2101, %v2071
      %v2103 = vrot.slane %v2102, 4
      %v2104 = vadd.f32 %v2102, %v2103
      %v2105 = vrot.slane %v2104, 2
      %v2106 = vadd.f32 %v2104, %v2105
      %v2107 = vrot.slane %v2106, 1
      %v2108 = vadd.f32 %v2106, %v2107
      %v2109 = vadd.f32 %v2039, %v2108
      %2110 = vst [vmem:[#allocation2 + $0x1] sm:$0x1] %v2109
      %p2111 = scmp.eq.s32.totalorder %s15, 1
      // Predicated region
      $region33: #{relu_conv_bn.2} parent=27 // pred_check
        %p2112 = pneg %p2111
      $region34: #{relu_conv_bn.2} parent=27 // pred_check_branch
        %2114 = sbr.rel (%p2112) target = $region36
      $region35: #{relu_conv_bn.2} parent=27 // pred_region
        %v2115 = vld [vmem:[#allocation2] sm:$0x1]
        %v2116 = vmul.f32 %v2115, 0.001953125
        %v2117 = vld [vmem:[#allocation2 + $0x1] sm:$0x1]
        %v2118 = vmul.f32 %v2117, 0.001953125
        %v2119 = vmul.f32 %v2116, %v2116
        %v2120 = vsub.f32 %v2118, %v2119
        %2121 = vst [vmem:[%s3] sm:$0x1] %v2116
        %v2122 = vadd.f32 %v2120, 1e-05
        %v2123 = vrsqrt.pop %v2122
        %v2124 = vmul.f32 %v2123, %v2122
        %v2125 = vmul.f32 %v2124, %v2123
        %v2126 = vmul.f32 0.5, %v2125
        %v2127 = vsub.f32 1.5, %v2126
        %v2128 = vmul.f32 %v2123, %v2127
        %vm2129 = vweird.f32 %v2122
        %vm2130 = vweird.f32 %v2123
        %vm2131 = vmor %vm2129, %vm2130
        %v2132 = vsel %vm2131, %v2123, %v2128
        %2133 = vst [vmem:[%s3 + $0x1] sm:$0x1] %v2132
      $region36: #{relu_conv_bn.2} parent=27 // pred_fallthru
        _
      %p2134 = scmp.lt.s32.totalorder %s15, 1
      %s2135 = scalar_select %p2134, %s15, 1
      %s2136 = smul.addr %s2135, 32
      %s2137 = smul.addr %s2136, 8
      %s2138 = scalar_lea.vmem %s2, %s2137
      // Predicated region
      $region37: #{relu_conv_bn.2} parent=27 // pred_check
        %p2139 = pneg %p80
      $region38: #{relu_conv_bn.2} parent=27 // pred_check_branch
        %2141 = sbr.rel (%p2139) target = $region40
      $region39: #{relu_conv_bn.2} parent=27 // pred_region
        _
      $region40: #{relu_conv_bn.2} parent=27 // pred_fallthru
        _
      // Predicated region
      $region41: #{relu_conv_bn.2} parent=27 // pred_check
        %p2142 = pneg %p101
      $region42: #{relu_conv_bn.2} parent=27 // pred_check_branch
        %2144 = sbr.rel (%p2142) target = $region44
      $region43: #{relu_conv_bn.2} parent=27 // pred_region
        _
      $region44: #{relu_conv_bn.2} parent=27 // pred_fallthru
        _
      // Predicated region
      $region45: #{relu_conv_bn.2} parent=27 // pred_check
        %p2145 = pneg %p101
      $region46: #{relu_conv_bn.2} parent=27 // pred_check_branch
        %2147 = sbr.rel (%p2145) target = $region48
      $region47: #{relu_conv_bn.2} parent=27 // pred_region
        _
      $region48: #{relu_conv_bn.2} parent=27 // pred_fallthru
        _
    $region28: #{relu_conv_bn.2} parent=5 // pred_fallthru
      _
    %p2148 = scmp.le.s32.totalorder 2, %s10
    // Predicated region
    $region49: #{relu_conv_bn.2} parent=5 // pred_check
      %p2149 = pneg %p2148
    $region50: #{relu_conv_bn.2} parent=5 // pred_check_branch
      %2151 = sbr.rel (%p2149) target = $region52
    $region51: #{relu_conv_bn.2} parent=5 // pred_region
      %s2152 = ssub.s32 %s10, 2
      // Predicated region
      $region53: #{relu_conv_bn.2} parent=51 // pred_check
        %p2153 = pneg %p86
      $region54: #{relu_conv_bn.2} parent=51 // pred_check_branch
        %2155 = sbr.rel (%p2153) target = $region56
      $region55: #{relu_conv_bn.2} parent=51 // pred_region
        %p2156 = scmp.lt.s32.totalorder %s16, 1
        %s2157 = scalar_select %p2156, %s16, 1
        %s2158 = smul.addr %s2157, 32
        %s2159 = smul.addr %s2158, 8
        %s2160 = scalar_lea.vmem %s2, %s2159
      $region56: #{relu_conv_bn.2} parent=51 // pred_fallthru
        _
    $region52: #{relu_conv_bn.2} parent=5 // pred_fallthru
      _
  $region6: #{relu_conv_bn.2} parent=0 // loop_footer
    %s14 = sadd.s32 1, %s10
  $region7: #{relu_conv_bn.2} parent=0 // loop_footer_branch
    %9 = sbr.rel target = $region3
  $region8: #{relu_conv_bn.2} parent=0 // loop_exit
    _

</llo_original>
